<compile_context>
chip_gen: v7x
topology: tpu7x:2x2x1
jax: 0.10.0
libtpu: 0.0.40
codegen_flags: <defaults>
</compile_context>

<pallas_src>
import functools

import jax
import jax.numpy as jnp
from jax import lax
from jax.experimental import pallas as pl
from jax.experimental.pallas import tpu as pltpu

# ----------------------- scaled-down XLNet-base config -----------------------
VOCAB = 128
HIDDEN = 64          # XLNet-base: 768
N_HEADS = 4          # XLNet-base: 12
HEAD_DIM = HIDDEN // N_HEADS
FF_DIM = 128         # XLNet-base: 3072
N_LAYERS = 2         # XLNet-base: 12
NUM_LABELS = 15      # len(label_cols)
L_PAD = 128          # classifier lane padding (unmasked vst)
LN_EPS = 1e-12


# ------------------------------- Pallas kernels -------------------------------
def _layernorm(h, g, b):
    mean = jnp.mean(h, axis=-1, keepdims=True)
    c = h - mean
    var = jnp.mean(c * c, axis=-1, keepdims=True)
    return c * lax.rsqrt(var + LN_EPS) * g + b


def _xlnet_layer_kernel(x_ref, maskb_ref, wqkv_ref, bqkv_ref, wo_ref,
                        ln1_g_ref, ln1_b_ref, w1_ref, b1_ref, w2_ref, b2_ref,
                        ln2_g_ref, ln2_b_ref, o_ref, *, n_heads, head_dim, scale):
    # One full transformer layer for one batch element: [S, H] in, [S, H] out.
    x = x_ref[...]                                            # [S, H] f32
    h = n_heads * head_dim

    # Fused QKV projection (bf16 operands, f32 accumulation). r_w_bias is folded
    # into the q-slice of bqkv, so q already carries the content bias.
    qkv = jnp.dot(x.astype(jnp.bfloat16), wqkv_ref[...],
                  preferred_element_type=jnp.float32) + bqkv_ref[...]   # [S, 3H]
    q = qkv[:, :h]
    k = qkv[:, h:2 * h]
    v = qkv[:, 2 * h:]

    mask_bias = maskb_ref[0]                                  # [1, S] additive (f32)

    head_outs = []
    for n in range(n_heads):                                  # short static unroll
        lo, hi = n * head_dim, (n + 1) * head_dim
        qh = q[:, lo:hi].astype(jnp.bfloat16)                 # [S, D]
        kh = k[:, lo:hi].astype(jnp.bfloat16)                 # [S, D]
        vh = v[:, lo:hi].astype(jnp.bfloat16)                 # [S, D]
        # scores[i, j] = <q_i, k_j> (contract last dims, no explicit transpose)
        scores = lax.dot_general(qh, kh, (((1,), (1,)), ((), ())),
                                 preferred_element_type=jnp.float32) * scale
        scores = scores + mask_bias                           # padding bias (f32)
        m = jnp.max(scores, axis=-1, keepdims=True)
        p = jnp.exp(scores - m)
        denom = jnp.sum(p, axis=-1, keepdims=True)
        probs = p * pl.reciprocal(denom, approx=True)
        head_outs.append(jnp.dot(probs.astype(jnp.bfloat16), vh,
                                 preferred_element_type=jnp.float32))
    attn = jnp.concatenate(head_outs, axis=-1)                # [S, H] f32

    # Output projection + residual + post-LN (f32 math).
    proj = jnp.dot(attn.astype(jnp.bfloat16), wo_ref[...],
                   preferred_element_type=jnp.float32)
    x1 = _layernorm(proj + x, ln1_g_ref[...], ln1_b_ref[...])

    # Position-wise feed-forward + residual + post-LN.
    h1 = jnp.dot(x1.astype(jnp.bfloat16), w1_ref[...],
                 preferred_element_type=jnp.float32) + b1_ref[...]
    h1 = jax.nn.gelu(h1, approximate=True)
    h2 = jnp.dot(h1.astype(jnp.bfloat16), w2_ref[...],
                 preferred_element_type=jnp.float32) + b2_ref[...]
    o_ref[...] = _layernorm(h2 + x1, ln2_g_ref[...], ln2_b_ref[...])


def xlnet_layer(x, mask_bias, layer, qkv_bias, *, batch, seq):
    H = HIDDEN
    const = lambda b: (0, 0)
    return pl.pallas_call(
        functools.partial(_xlnet_layer_kernel, n_heads=N_HEADS,
                          head_dim=HEAD_DIM, scale=1.0 / (HEAD_DIM ** 0.5)),
        out_shape=jax.ShapeDtypeStruct((batch * seq, H), jnp.float32),
        grid=(batch,),
        in_specs=[
            pl.BlockSpec((seq, H), lambda b: (b, 0)),        # x  [tokens, H]
            pl.BlockSpec((1, 1, seq), lambda b: (b, 0, 0)),  # additive mask row
            pl.BlockSpec((H, 3 * H), const),                 # wqkv (bf16)
            pl.BlockSpec((1, 3 * H), const),                 # qkv bias (+r_w_bias)
            pl.BlockSpec((H, H), const),                     # wo (bf16)
            pl.BlockSpec((1, H), const),                     # ln1 gamma
            pl.BlockSpec((1, H), const),                     # ln1 beta
            pl.BlockSpec((H, FF_DIM), const),                # w1 (bf16)
            pl.BlockSpec((1, FF_DIM), const),                # b1
            pl.BlockSpec((FF_DIM, H), const),                # w2 (bf16)
            pl.BlockSpec((1, H), const),                     # b2
            pl.BlockSpec((1, H), const),                     # ln2 gamma
            pl.BlockSpec((1, H), const),                     # ln2 beta
        ],
        out_specs=pl.BlockSpec((seq, H), lambda b: (b, 0)),
        compiler_params=pltpu.CompilerParams(
            dimension_semantics=("parallel",)),
    )(x, mask_bias, layer['wqkv'], qkv_bias, layer['wo'],
      layer['ln1_g'], layer['ln1_b'], layer['w1'], layer['b1'],
      layer['w2'], layer['b2'], layer['ln2_g'], layer['ln2_b'])


def _pool_classify_kernel(h_ref, w_ref, b_ref, o_ref, *, batch, seq):
    # torch.mean(last_hidden_state, 1) then nn.Linear(H, num_labels).
    # The 1/S mean scale is folded into w, so pooling is a plain sum here.
    h = h_ref[...]                                            # [B*S, H] f32
    rows = [jnp.sum(h[b * seq:(b + 1) * seq, :], axis=0, keepdims=True)
            for b in range(batch)]
    pooled = jnp.concatenate(rows, axis=0)                    # [B, H]
    o_ref[...] = jnp.dot(pooled.astype(jnp.bfloat16), w_ref[...],
                         preferred_element_type=jnp.float32) + b_ref[...]


def pool_and_classify(h, w_pad, b_pad, *, batch, seq):
    return pl.pallas_call(
        functools.partial(_pool_classify_kernel, batch=batch, seq=seq),
        out_shape=jax.ShapeDtypeStruct((batch, L_PAD), jnp.float32),
        grid=(1,),
        in_specs=[pl.BlockSpec((batch * seq, HIDDEN), lambda i: (0, 0)),
                  pl.BlockSpec((HIDDEN, L_PAD), lambda i: (0, 0)),
                  pl.BlockSpec((1, L_PAD), lambda i: (0, 0))],
        out_specs=pl.BlockSpec((batch, L_PAD), lambda i: (0, 0)),
    )(h, w_pad, b_pad)


# ------------------------------ parameter init ------------------------------
def init_params(key):
    keys = jax.random.split(key, 3 + N_LAYERS)

    def nrm(k, shape, std=0.02):
        return jax.random.normal(k, shape, jnp.float32) * std

    params = {
        'word_emb': nrm(keys[0], (VOCAB, HIDDEN)),
        'r_w_bias': nrm(keys[1], (N_HEADS, HEAD_DIM)),        # shared content bias
    }
    layers = []
    for l in range(N_LAYERS):
        lk = jax.random.split(keys[3 + l], 4)
        layers.append(dict(
            wqkv=nrm(lk[0], (HIDDEN, 3 * HIDDEN)).astype(jnp.bfloat16),
            wo=nrm(lk[1], (HIDDEN, HIDDEN)).astype(jnp.bfloat16),
            ln1_g=jnp.ones((1, HIDDEN), jnp.float32),
            ln1_b=jnp.zeros((1, HIDDEN), jnp.float32),
            w1=nrm(lk[2], (HIDDEN, FF_DIM)).astype(jnp.bfloat16),
            b1=jnp.zeros((1, FF_DIM), jnp.float32),
            w2=nrm(lk[3], (FF_DIM, HIDDEN)).astype(jnp.bfloat16),
            b2=jnp.zeros((1, HIDDEN), jnp.float32),
            ln2_g=jnp.ones((1, HIDDEN), jnp.float32),
            ln2_b=jnp.zeros((1, HIDDEN), jnp.float32),
        ))
    params['layers'] = layers
    # classifier: torch.nn.Linear(768, num_labels) with xavier_normal_ weight init
    xav_std = (2.0 / (HIDDEN + NUM_LABELS)) ** 0.5
    params['cls_w'] = jax.random.normal(keys[2], (HIDDEN, NUM_LABELS),
                                        jnp.float32) * xav_std
    params['cls_b'] = jnp.zeros((NUM_LABELS,), jnp.float32)
    return params


# --------------------------------- forward ----------------------------------
def xlnet_multilabel_forward(params, input_ids, attention_mask=None, labels=None):
    B, S = input_ids.shape

    if attention_mask is None:
        attention_mask = jnp.ones((B, S), jnp.float32)
    # additive padding-mask bias, one row per batch element (kept f32)
    mask_bias = ((1.0 - attention_mask.astype(jnp.float32)) * -1e9).reshape(B, 1, S)

    # embedding lookup (glue)
    x = params['word_emb'][input_ids].reshape(B * S, HIDDEN).astype(jnp.float32)

    # fold r_w_bias (content bias) into the q-slice of the fused QKV bias row
    qkv_bias = jnp.concatenate(
        [params['r_w_bias'].reshape(1, HIDDEN),
         jnp.zeros((1, 2 * HIDDEN), jnp.float32)], axis=1)

    for layer in params['layers']:
        x = xlnet_layer(x, mask_bias, layer, qkv_bias, batch=B, seq=S)

    # classifier: pad labels dim to 128 lanes, fold the 1/S mean scale into W
    w_pad = jnp.zeros((HIDDEN, L_PAD), jnp.float32).at[:, :NUM_LABELS].set(
        params['cls_w'] / float(S)).astype(jnp.bfloat16)
    b_pad = jnp.zeros((1, L_PAD), jnp.float32).at[:, :NUM_LABELS].set(
        params['cls_b'])

    logits = pool_and_classify(x, w_pad, b_pad, batch=B, seq=S)[:, :NUM_LABELS]

    if labels is not None:
        # BCEWithLogitsLoss (mean reduction) — scalar glue outside the kernels
        loss = -jnp.mean(labels * jax.nn.log_sigmoid(logits)
                         + (1.0 - labels) * jax.nn.log_sigmoid(-logits))
        return loss
    return logits


# ----------------------------------- main ------------------------------------
if __name__ == "__main__":
    key = jax.random.PRNGKey(0)
    pkey, dkey = jax.random.split(key)
    params = init_params(pkey)

    B, S = 2, 8
    input_ids = jax.random.randint(dkey, (B, S), 0, VOCAB, dtype=jnp.int32)
    attention_mask = jnp.ones((B, S), jnp.float32)

    fwd = jax.jit(lambda ids, m: xlnet_multilabel_forward(params, ids, m))
    logits = fwd(input_ids, attention_mask)
    logits = jax.block_until_ready(logits)
    assert logits.shape == (B, NUM_LABELS), logits.shape
    assert bool(jnp.all(jnp.isfinite(logits)))
    print("KERNEL_OK")
</pallas_src>

<mosaic_0001>
module attributes {stable_mosaic.version = 11 : i64} {
  func.func @_pool_classify_kernel(%arg0: i32, %arg1: memref<16x64xf32, #tpu.memory_space<vmem>>, %arg2: memref<64x128xbf16, #tpu.memory_space<vmem>>, %arg3: memref<1x128xf32, #tpu.memory_space<vmem>>, %arg4: memref<2x128xf32, #tpu.memory_space<vmem>>) attributes {dimension_semantics = [#tpu.dimension_semantics<arbitrary>], iteration_bounds = array<i64: 1>, scalar_prefetch = 0 : i64, scratch_operands = 0 : i64, tpu.core_type = #tpu.core_type<tc>, window_params = [{pipeline_mode = #tpu.pipeline_mode<synchronous>, transform_indices = @transform_0, window_bounds = array<i64: 16, 64>}, {pipeline_mode = #tpu.pipeline_mode<synchronous>, transform_indices = @transform_1, window_bounds = array<i64: 64, 128>}, {pipeline_mode = #tpu.pipeline_mode<synchronous>, transform_indices = @transform_2, window_bounds = array<i64: 1, 128>}, {pipeline_mode = #tpu.pipeline_mode<synchronous>, transform_indices = @transform_3, window_bounds = array<i64: 2, 128>}]} {
    %c0 = arith.constant 0 : index
    %c0_0 = arith.constant 0 : index
    %0 = vector.load %arg1[%c0, %c0_0] : memref<16x64xf32, #tpu.memory_space<vmem>>, vector<16x64xf32>
    %1 = vector.extract_strided_slice %0 {offsets = [0, 0], sizes = [8, 64], strides = [1, 1]} : vector<16x64xf32> to vector<8x64xf32>
    %cst = arith.constant dense<0.000000e+00> : vector<64xf32>
    %2 = vector.multi_reduction <add>, %1, %cst [0] : vector<8x64xf32> to vector<64xf32>
    %3 = vector.shape_cast %2 : vector<64xf32> to vector<1x64xf32>
    %4 = vector.extract_strided_slice %0 {offsets = [8, 0], sizes = [8, 64], strides = [1, 1]} : vector<16x64xf32> to vector<8x64xf32>
    %cst_1 = arith.constant dense<0.000000e+00> : vector<64xf32>
    %5 = vector.multi_reduction <add>, %4, %cst_1 [0] : vector<8x64xf32> to vector<64xf32>
    %6 = vector.shape_cast %5 : vector<64xf32> to vector<1x64xf32>
    %7 = tpu.concatenate %3, %6 in 0 : vector<1x64xf32>, vector<1x64xf32> -> vector<2x64xf32>
    %8 = arith.truncf %7 : vector<2x64xf32> to vector<2x64xbf16>
    %c0_2 = arith.constant 0 : index
    %c0_3 = arith.constant 0 : index
    %9 = vector.load %arg2[%c0_2, %c0_3] : memref<64x128xbf16, #tpu.memory_space<vmem>>, vector<64x128xbf16>
    %cst_4 = arith.constant dense<0.000000e+00> : vector<2x128xf32>
    %10 = tpu.matmul %8, %9, %cst_4 {dimension_numbers = #tpu.dot_dimension_numbers<[1], [0], [0], [1], [0, 0, 1, 1], [], []>} : vector<2x64xbf16>, vector<64x128xbf16>, vector<2x128xf32> -> vector<2x128xf32>
    %c0_5 = arith.constant 0 : index
    %c0_6 = arith.constant 0 : index
    %11 = vector.load %arg3[%c0_5, %c0_6] : memref<1x128xf32, #tpu.memory_space<vmem>>, vector<1x128xf32>
    %12 = vector.broadcast %11 : vector<1x128xf32> to vector<2x128xf32>
    %13 = arith.addf %10, %12 : vector<2x128xf32>
    %c0_7 = arith.constant 0 : index
    %c0_8 = arith.constant 0 : index
    %14 = vector.load %arg4[%c0_7, %c0_8] : memref<2x128xf32, #tpu.memory_space<vmem>>, vector<2x128xf32>
    tpu.vector_store %arg4[%c0_7, %c0_8], %13 {strides = array<i32>} : memref<2x128xf32, #tpu.memory_space<vmem>>, vector<2x128xf32>,
    return
  }
  func.func @transform_0(%arg0: i32) -> (i32, i32) {
    %c0_i32 = arith.constant 0 : i32
    %c0_i32_0 = arith.constant 0 : i32
    %c0_i32_1 = arith.constant 0 : i32
    return %c0_i32, %c0_i32_0 : i32, i32
  }
  func.func @transform_1(%arg0: i32) -> (i32, i32) {
    %c0_i32 = arith.constant 0 : i32
    %c0_i32_0 = arith.constant 0 : i32
    %c0_i32_1 = arith.constant 0 : i32
    return %c0_i32, %c0_i32_0 : i32, i32
  }
  func.func @transform_2(%arg0: i32) -> (i32, i32) {
    %c0_i32 = arith.constant 0 : i32
    %c0_i32_0 = arith.constant 0 : i32
    %c0_i32_1 = arith.constant 0 : i32
    return %c0_i32, %c0_i32_0 : i32, i32
  }
  func.func @transform_3(%arg0: i32) -> (i32, i32) {
    %c0_i32 = arith.constant 0 : i32
    %c0_i32_0 = arith.constant 0 : i32
    %c0_i32_1 = arith.constant 0 : i32
    return %c0_i32, %c0_i32_0 : i32, i32
  }
}

module attributes {stable_mosaic.version = 11 : i64} {
  func.func @_xlnet_layer_kernel(%arg0: i32, %arg1: memref<8x64xf32, #tpu.memory_space<vmem>>, %arg2: memref<1x1x8xf32, #tpu.memory_space<vmem>>, %arg3: memref<64x192xbf16, #tpu.memory_space<vmem>>, %arg4: memref<1x192xf32, #tpu.memory_space<vmem>>, %arg5: memref<64x64xbf16, #tpu.memory_space<vmem>>, %arg6: memref<1x64xf32, #tpu.memory_space<vmem>>, %arg7: memref<1x64xf32, #tpu.memory_space<vmem>>, %arg8: memref<64x128xbf16, #tpu.memory_space<vmem>>, %arg9: memref<1x128xf32, #tpu.memory_space<vmem>>, %arg10: memref<128x64xbf16, #tpu.memory_space<vmem>>, %arg11: memref<1x64xf32, #tpu.memory_space<vmem>>, %arg12: memref<1x64xf32, #tpu.memory_space<vmem>>, %arg13: memref<1x64xf32, #tpu.memory_space<vmem>>, %arg14: memref<8x64xf32, #tpu.memory_space<vmem>>) attributes {dimension_semantics = [#tpu.dimension_semantics<parallel>], iteration_bounds = array<i64: 2>, scalar_prefetch = 0 : i64, scratch_operands = 0 : i64, tpu.core_type = #tpu.core_type<tc>, window_params = [{transform_indices = @transform_0, window_bounds = array<i64: 8, 64>}, {transform_indices = @transform_1, window_bounds = array<i64: 1, 1, 8>}, {pipeline_mode = #tpu.pipeline_mode<synchronous>, transform_indices = @transform_2, window_bounds = array<i64: 64, 192>}, {pipeline_mode = #tpu.pipeline_mode<synchronous>, transform_indices = @transform_3, window_bounds = array<i64: 1, 192>}, {pipeline_mode = #tpu.pipeline_mode<synchronous>, transform_indices = @transform_4, window_bounds = array<i64: 64, 64>}, {pipeline_mode = #tpu.pipeline_mode<synchronous>, transform_indices = @transform_5, window_bounds = array<i64: 1, 64>}, {pipeline_mode = #tpu.pipeline_mode<synchronous>, transform_indices = @transform_6, window_bounds = array<i64: 1, 64>}, {pipeline_mode = #tpu.pipeline_mode<synchronous>, transform_indices = @transform_7, window_bounds = array<i64: 64, 128>}, {pipeline_mode = #tpu.pipeline_mode<synchronous>, transform_indices = @transform_8, window_bounds = array<i64: 1, 128>}, {pipeline_mode = #tpu.pipeline_mode<synchronous>, transform_indices = @transform_9, window_bounds = array<i64: 128, 64>}, {pipeline_mode = #tpu.pipeline_mode<synchronous>, transform_indices = @transform_10, window_bounds = array<i64: 1, 64>}, {pipeline_mode = #tpu.pipeline_mode<synchronous>, transform_indices = @transform_11, window_bounds = array<i64: 1, 64>}, {pipeline_mode = #tpu.pipeline_mode<synchronous>, transform_indices = @transform_12, window_bounds = array<i64: 1, 64>}, {transform_indices = @transform_13, window_bounds = array<i64: 8, 64>}]} {
    %c0 = arith.constant 0 : index
    %c0_0 = arith.constant 0 : index
    %0 = vector.load %arg1[%c0, %c0_0] : memref<8x64xf32, #tpu.memory_space<vmem>>, vector<8x64xf32>
    %1 = arith.truncf %0 : vector<8x64xf32> to vector<8x64xbf16>
    %c0_1 = arith.constant 0 : index
    %c0_2 = arith.constant 0 : index
    %2 = vector.load %arg3[%c0_1, %c0_2] : memref<64x192xbf16, #tpu.memory_space<vmem>>, vector<64x192xbf16>
    %cst = arith.constant dense<0.000000e+00> : vector<8x192xf32>
    %3 = tpu.matmul %1, %2, %cst {dimension_numbers = #tpu.dot_dimension_numbers<[1], [0], [0], [1], [0, 0, 1, 1], [], []>} : vector<8x64xbf16>, vector<64x192xbf16>, vector<8x192xf32> -> vector<8x192xf32>
    %c0_3 = arith.constant 0 : index
    %c0_4 = arith.constant 0 : index
    %4 = vector.load %arg4[%c0_3, %c0_4] : memref<1x192xf32, #tpu.memory_space<vmem>>, vector<1x192xf32>
    %5 = vector.broadcast %4 : vector<1x192xf32> to vector<8x192xf32>
    %6 = arith.addf %3, %5 : vector<8x192xf32>
    %7 = vector.extract_strided_slice %6 {offsets = [0, 0], sizes = [8, 64], strides = [1, 1]} : vector<8x192xf32> to vector<8x64xf32>
    %8 = vector.extract_strided_slice %6 {offsets = [0, 64], sizes = [8, 64], strides = [1, 1]} : vector<8x192xf32> to vector<8x64xf32>
    %9 = vector.extract_strided_slice %6 {offsets = [0, 128], sizes = [8, 64], strides = [1, 1]} : vector<8x192xf32> to vector<8x64xf32>
    %c0_5 = arith.constant 0 : index
    %c0_6 = arith.constant 0 : index
    %c0_7 = arith.constant 0 : index
    %10 = vector.load %arg2[%c0_5, %c0_6, %c0_7] : memref<1x1x8xf32, #tpu.memory_space<vmem>>, vector<1x1x8xf32>
    %11 = vector.shape_cast %10 : vector<1x1x8xf32> to vector<1x8xf32>
    %12 = vector.extract_strided_slice %7 {offsets = [0, 0], sizes = [8, 16], strides = [1, 1]} : vector<8x64xf32> to vector<8x16xf32>
    %13 = arith.truncf %12 : vector<8x16xf32> to vector<8x16xbf16>
    %14 = vector.extract_strided_slice %8 {offsets = [0, 0], sizes = [8, 16], strides = [1, 1]} : vector<8x64xf32> to vector<8x16xf32>
    %15 = arith.truncf %14 : vector<8x16xf32> to vector<8x16xbf16>
    %16 = vector.extract_strided_slice %9 {offsets = [0, 0], sizes = [8, 16], strides = [1, 1]} : vector<8x64xf32> to vector<8x16xf32>
    %17 = arith.truncf %16 : vector<8x16xf32> to vector<8x16xbf16>
    %cst_8 = arith.constant dense<0.000000e+00> : vector<8x8xf32>
    %18 = tpu.matmul %13, %15, %cst_8 {dimension_numbers = #tpu.dot_dimension_numbers<[1], [1], [0], [0], [0, 0, 1, 0], [], []>} : vector<8x16xbf16>, vector<8x16xbf16>, vector<8x8xf32> -> vector<8x8xf32>
    %cst_9 = arith.constant 2.500000e-01 : f32
    %19 = vector.broadcast %cst_9 : f32 to vector<8x8xf32>
    %20 = arith.mulf %18, %19 : vector<8x8xf32>
    %21 = vector.broadcast %11 : vector<1x8xf32> to vector<8x8xf32>
    %22 = arith.addf %20, %21 : vector<8x8xf32>
    %cst_10 = arith.constant dense<0xFF800000> : vector<8xf32>
    %23 = vector.multi_reduction <maximumf>, %22, %cst_10 [1] : vector<8x8xf32> to vector<8xf32>
    %24 = vector.shape_cast %23 : vector<8xf32> to vector<8x1xf32>
    %25 = vector.broadcast %24 : vector<8x1xf32> to vector<8x8xf32>
    %26 = arith.subf %22, %25 : vector<8x8xf32>
    %27 = math.exp %26 : vector<8x8xf32>
    %cst_11 = arith.constant dense<0.000000e+00> : vector<8xf32>
    %28 = vector.multi_reduction <add>, %27, %cst_11 [1] : vector<8x8xf32> to vector<8xf32>
    %29 = vector.shape_cast %28 : vector<8xf32> to vector<8x1xf32>
    %30 = tpu.reciprocal %29 {approx = true} : vector<8x1xf32> -> vector<8x1xf32>
    %31 = vector.broadcast %30 : vector<8x1xf32> to vector<8x8xf32>
    %32 = arith.mulf %27, %31 : vector<8x8xf32>
    %33 = arith.truncf %32 : vector<8x8xf32> to vector<8x8xbf16>
    %cst_12 = arith.constant dense<0.000000e+00> : vector<8x16xf32>
    %34 = tpu.matmul %33, %17, %cst_12 {dimension_numbers = #tpu.dot_dimension_numbers<[1], [0], [0], [1], [0, 0, 1, 1], [], []>} : vector<8x8xbf16>, vector<8x16xbf16>, vector<8x16xf32> -> vector<8x16xf32>
    %35 = vector.extract_strided_slice %7 {offsets = [0, 16], sizes = [8, 16], strides = [1, 1]} : vector<8x64xf32> to vector<8x16xf32>
    %36 = arith.truncf %35 : vector<8x16xf32> to vector<8x16xbf16>
    %37 = vector.extract_strided_slice %8 {offsets = [0, 16], sizes = [8, 16], strides = [1, 1]} : vector<8x64xf32> to vector<8x16xf32>
    %38 = arith.truncf %37 : vector<8x16xf32> to vector<8x16xbf16>
    %39 = vector.extract_strided_slice %9 {offsets = [0, 16], sizes = [8, 16], strides = [1, 1]} : vector<8x64xf32> to vector<8x16xf32>
    %40 = arith.truncf %39 : vector<8x16xf32> to vector<8x16xbf16>
    %cst_13 = arith.constant dense<0.000000e+00> : vector<8x8xf32>
    %41 = tpu.matmul %36, %38, %cst_13 {dimension_numbers = #tpu.dot_dimension_numbers<[1], [1], [0], [0], [0, 0, 1, 0], [], []>} : vector<8x16xbf16>, vector<8x16xbf16>, vector<8x8xf32> -> vector<8x8xf32>
    %cst_14 = arith.constant 2.500000e-01 : f32
    %42 = vector.broadcast %cst_14 : f32 to vector<8x8xf32>
    %43 = arith.mulf %41, %42 : vector<8x8xf32>
    %44 = vector.broadcast %11 : vector<1x8xf32> to vector<8x8xf32>
    %45 = arith.addf %43, %44 : vector<8x8xf32>
    %cst_15 = arith.constant dense<0xFF800000> : vector<8xf32>
    %46 = vector.multi_reduction <maximumf>, %45, %cst_15 [1] : vector<8x8xf32> to vector<8xf32>
    %47 = vector.shape_cast %46 : vector<8xf32> to vector<8x1xf32>
    %48 = vector.broadcast %47 : vector<8x1xf32> to vector<8x8xf32>
    %49 = arith.subf %45, %48 : vector<8x8xf32>
    %50 = math.exp %49 : vector<8x8xf32>
    %cst_16 = arith.constant dense<0.000000e+00> : vector<8xf32>
    %51 = vector.multi_reduction <add>, %50, %cst_16 [1] : vector<8x8xf32> to vector<8xf32>
    %52 = vector.shape_cast %51 : vector<8xf32> to vector<8x1xf32>
    %53 = tpu.reciprocal %52 {approx = true} : vector<8x1xf32> -> vector<8x1xf32>
    %54 = vector.broadcast %53 : vector<8x1xf32> to vector<8x8xf32>
    %55 = arith.mulf %50, %54 : vector<8x8xf32>
    %56 = arith.truncf %55 : vector<8x8xf32> to vector<8x8xbf16>
    %cst_17 = arith.constant dense<0.000000e+00> : vector<8x16xf32>
    %57 = tpu.matmul %56, %40, %cst_17 {dimension_numbers = #tpu.dot_dimension_numbers<[1], [0], [0], [1], [0, 0, 1, 1], [], []>} : vector<8x8xbf16>, vector<8x16xbf16>, vector<8x16xf32> -> vector<8x16xf32>
    %58 = vector.extract_strided_slice %7 {offsets = [0, 32], sizes = [8, 16], strides = [1, 1]} : vector<8x64xf32> to vector<8x16xf32>
    %59 = arith.truncf %58 : vector<8x16xf32> to vector<8x16xbf16>
    %60 = vector.extract_strided_slice %8 {offsets = [0, 32], sizes = [8, 16], strides = [1, 1]} : vector<8x64xf32> to vector<8x16xf32>
    %61 = arith.truncf %60 : vector<8x16xf32> to vector<8x16xbf16>
    %62 = vector.extract_strided_slice %9 {offsets = [0, 32], sizes = [8, 16], strides = [1, 1]} : vector<8x64xf32> to vector<8x16xf32>
    %63 = arith.truncf %62 : vector<8x16xf32> to vector<8x16xbf16>
    %cst_18 = arith.constant dense<0.000000e+00> : vector<8x8xf32>
    %64 = tpu.matmul %59, %61, %cst_18 {dimension_numbers = #tpu.dot_dimension_numbers<[1], [1], [0], [0], [0, 0, 1, 0], [], []>} : vector<8x16xbf16>, vector<8x16xbf16>, vector<8x8xf32> -> vector<8x8xf32>
    %cst_19 = arith.constant 2.500000e-01 : f32
    %65 = vector.broadcast %cst_19 : f32 to vector<8x8xf32>
    %66 = arith.mulf %64, %65 : vector<8x8xf32>
    %67 = vector.broadcast %11 : vector<1x8xf32> to vector<8x8xf32>
    %68 = arith.addf %66, %67 : vector<8x8xf32>
    %cst_20 = arith.constant dense<0xFF800000> : vector<8xf32>
    %69 = vector.multi_reduction <maximumf>, %68, %cst_20 [1] : vector<8x8xf32> to vector<8xf32>
    %70 = vector.shape_cast %69 : vector<8xf32> to vector<8x1xf32>
    %71 = vector.broadcast %70 : vector<8x1xf32> to vector<8x8xf32>
    %72 = arith.subf %68, %71 : vector<8x8xf32>
    %73 = math.exp %72 : vector<8x8xf32>
    %cst_21 = arith.constant dense<0.000000e+00> : vector<8xf32>
    %74 = vector.multi_reduction <add>, %73, %cst_21 [1] : vector<8x8xf32> to vector<8xf32>
    %75 = vector.shape_cast %74 : vector<8xf32> to vector<8x1xf32>
    %76 = tpu.reciprocal %75 {approx = true} : vector<8x1xf32> -> vector<8x1xf32>
    %77 = vector.broadcast %76 : vector<8x1xf32> to vector<8x8xf32>
    %78 = arith.mulf %73, %77 : vector<8x8xf32>
    %79 = arith.truncf %78 : vector<8x8xf32> to vector<8x8xbf16>
    %cst_22 = arith.constant dense<0.000000e+00> : vector<8x16xf32>
    %80 = tpu.matmul %79, %63, %cst_22 {dimension_numbers = #tpu.dot_dimension_numbers<[1], [0], [0], [1], [0, 0, 1, 1], [], []>} : vector<8x8xbf16>, vector<8x16xbf16>, vector<8x16xf32> -> vector<8x16xf32>
    %81 = vector.extract_strided_slice %7 {offsets = [0, 48], sizes = [8, 16], strides = [1, 1]} : vector<8x64xf32> to vector<8x16xf32>
    %82 = arith.truncf %81 : vector<8x16xf32> to vector<8x16xbf16>
    %83 = vector.extract_strided_slice %8 {offsets = [0, 48], sizes = [8, 16], strides = [1, 1]} : vector<8x64xf32> to vector<8x16xf32>
    %84 = arith.truncf %83 : vector<8x16xf32> to vector<8x16xbf16>
    %85 = vector.extract_strided_slice %9 {offsets = [0, 48], sizes = [8, 16], strides = [1, 1]} : vector<8x64xf32> to vector<8x16xf32>
    %86 = arith.truncf %85 : vector<8x16xf32> to vector<8x16xbf16>
    %cst_23 = arith.constant dense<0.000000e+00> : vector<8x8xf32>
    %87 = tpu.matmul %82, %84, %cst_23 {dimension_numbers = #tpu.dot_dimension_numbers<[1], [1], [0], [0], [0, 0, 1, 0], [], []>} : vector<8x16xbf16>, vector<8x16xbf16>, vector<8x8xf32> -> vector<8x8xf32>
    %cst_24 = arith.constant 2.500000e-01 : f32
    %88 = vector.broadcast %cst_24 : f32 to vector<8x8xf32>
    %89 = arith.mulf %87, %88 : vector<8x8xf32>
    %90 = vector.broadcast %11 : vector<1x8xf32> to vector<8x8xf32>
    %91 = arith.addf %89, %90 : vector<8x8xf32>
    %cst_25 = arith.constant dense<0xFF800000> : vector<8xf32>
    %92 = vector.multi_reduction <maximumf>, %91, %cst_25 [1] : vector<8x8xf32> to vector<8xf32>
    %93 = vector.shape_cast %92 : vector<8xf32> to vector<8x1xf32>
    %94 = vector.broadcast %93 : vector<8x1xf32> to vector<8x8xf32>
    %95 = arith.subf %91, %94 : vector<8x8xf32>
    %96 = math.exp %95 : vector<8x8xf32>
    %cst_26 = arith.constant dense<0.000000e+00> : vector<8xf32>
    %97 = vector.multi_reduction <add>, %96, %cst_26 [1] : vector<8x8xf32> to vector<8xf32>
    %98 = vector.shape_cast %97 : vector<8xf32> to vector<8x1xf32>
    %99 = tpu.reciprocal %98 {approx = true} : vector<8x1xf32> -> vector<8x1xf32>
    %100 = vector.broadcast %99 : vector<8x1xf32> to vector<8x8xf32>
    %101 = arith.mulf %96, %100 : vector<8x8xf32>
    %102 = arith.truncf %101 : vector<8x8xf32> to vector<8x8xbf16>
    %cst_27 = arith.constant dense<0.000000e+00> : vector<8x16xf32>
    %103 = tpu.matmul %102, %86, %cst_27 {dimension_numbers = #tpu.dot_dimension_numbers<[1], [0], [0], [1], [0, 0, 1, 1], [], []>} : vector<8x8xbf16>, vector<8x16xbf16>, vector<8x16xf32> -> vector<8x16xf32>
    %104 = tpu.concatenate %34, %57, %80, %103 in 1 : vector<8x16xf32>, vector<8x16xf32>, vector<8x16xf32>, vector<8x16xf32> -> vector<8x64xf32>
    %105 = arith.truncf %104 : vector<8x64xf32> to vector<8x64xbf16>
    %c0_28 = arith.constant 0 : index
    %c0_29 = arith.constant 0 : index
    %106 = vector.load %arg5[%c0_28, %c0_29] : memref<64x64xbf16, #tpu.memory_space<vmem>>, vector<64x64xbf16>
    %cst_30 = arith.constant dense<0.000000e+00> : vector<8x64xf32>
    %107 = tpu.matmul %105, %106, %cst_30 {dimension_numbers = #tpu.dot_dimension_numbers<[1], [0], [0], [1], [0, 0, 1, 1], [], []>} : vector<8x64xbf16>, vector<64x64xbf16>, vector<8x64xf32> -> vector<8x64xf32>
    %108 = arith.addf %107, %0 : vector<8x64xf32>
    %c0_31 = arith.constant 0 : index
    %c0_32 = arith.constant 0 : index
    %109 = vector.load %arg6[%c0_31, %c0_32] : memref<1x64xf32, #tpu.memory_space<vmem>>, vector<1x64xf32>
    %c0_33 = arith.constant 0 : index
    %c0_34 = arith.constant 0 : index
    %110 = vector.load %arg7[%c0_33, %c0_34] : memref<1x64xf32, #tpu.memory_space<vmem>>, vector<1x64xf32>
    %cst_35 = arith.constant dense<0.000000e+00> : vector<8xf32>
    %111 = vector.multi_reduction <add>, %108, %cst_35 [1] : vector<8x64xf32> to vector<8xf32>
    %112 = vector.shape_cast %111 : vector<8xf32> to vector<8x1xf32>
    %cst_36 = arith.constant 6.400000e+01 : f32
    %113 = vector.broadcast %cst_36 : f32 to vector<8x1xf32>
    %114 = arith.divf %112, %113 : vector<8x1xf32>
    %115 = vector.broadcast %114 : vector<8x1xf32> to vector<8x64xf32>
    %116 = arith.subf %108, %115 : vector<8x64xf32>
    %117 = arith.mulf %116, %116 : vector<8x64xf32>
    %cst_37 = arith.constant dense<0.000000e+00> : vector<8xf32>
    %118 = vector.multi_reduction <add>, %117, %cst_37 [1] : vector<8x64xf32> to vector<8xf32>
    %119 = vector.shape_cast %118 : vector<8xf32> to vector<8x1xf32>
    %cst_38 = arith.constant 6.400000e+01 : f32
    %120 = vector.broadcast %cst_38 : f32 to vector<8x1xf32>
    %121 = arith.divf %119, %120 : vector<8x1xf32>
    %cst_39 = arith.constant 9.99999996E-13 : f32
    %122 = vector.broadcast %cst_39 : f32 to vector<8x1xf32>
    %123 = arith.addf %121, %122 : vector<8x1xf32>
    %124 = math.rsqrt %123 : vector<8x1xf32>
    %125 = vector.broadcast %124 : vector<8x1xf32> to vector<8x64xf32>
    %126 = arith.mulf %116, %125 : vector<8x64xf32>
    %127 = vector.broadcast %109 : vector<1x64xf32> to vector<8x64xf32>
    %128 = arith.mulf %126, %127 : vector<8x64xf32>
    %129 = vector.broadcast %110 : vector<1x64xf32> to vector<8x64xf32>
    %130 = arith.addf %128, %129 : vector<8x64xf32>
    %131 = arith.truncf %130 : vector<8x64xf32> to vector<8x64xbf16>
    %c0_40 = arith.constant 0 : index
    %c0_41 = arith.constant 0 : index
    %132 = vector.load %arg8[%c0_40, %c0_41] : memref<64x128xbf16, #tpu.memory_space<vmem>>, vector<64x128xbf16>
    %cst_42 = arith.constant dense<0.000000e+00> : vector<8x128xf32>
    %133 = tpu.matmul %131, %132, %cst_42 {dimension_numbers = #tpu.dot_dimension_numbers<[1], [0], [0], [1], [0, 0, 1, 1], [], []>} : vector<8x64xbf16>, vector<64x128xbf16>, vector<8x128xf32> -> vector<8x128xf32>
    %c0_43 = arith.constant 0 : index
    %c0_44 = arith.constant 0 : index
    %134 = vector.load %arg9[%c0_43, %c0_44] : memref<1x128xf32, #tpu.memory_space<vmem>>, vector<1x128xf32>
    %135 = vector.broadcast %134 : vector<1x128xf32> to vector<8x128xf32>
    %136 = arith.addf %133, %135 : vector<8x128xf32>
    %137 = arith.mulf %136, %136 : vector<8x128xf32>
    %138 = arith.mulf %136, %137 : vector<8x128xf32>
    %cst_45 = arith.constant 4.471500e-02 : f32
    %139 = vector.broadcast %cst_45 : f32 to vector<8x128xf32>
    %140 = arith.mulf %139, %138 : vector<8x128xf32>
    %141 = arith.addf %136, %140 : vector<8x128xf32>
    %cst_46 = arith.constant 0.797884583 : f32
    %142 = vector.broadcast %cst_46 : f32 to vector<8x128xf32>
    %143 = arith.mulf %142, %141 : vector<8x128xf32>
    %144 = math.tanh %143 : vector<8x128xf32>
    %cst_47 = arith.constant 1.000000e+00 : f32
    %145 = vector.broadcast %cst_47 : f32 to vector<8x128xf32>
    %146 = arith.addf %145, %144 : vector<8x128xf32>
    %cst_48 = arith.constant 5.000000e-01 : f32
    %147 = vector.broadcast %cst_48 : f32 to vector<8x128xf32>
    %148 = arith.mulf %147, %146 : vector<8x128xf32>
    %149 = arith.mulf %136, %148 : vector<8x128xf32>
    %150 = arith.truncf %149 : vector<8x128xf32> to vector<8x128xbf16>
    %c0_49 = arith.constant 0 : index
    %c0_50 = arith.constant 0 : index
    %151 = vector.load %arg10[%c0_49, %c0_50] : memref<128x64xbf16, #tpu.memory_space<vmem>>, vector<128x64xbf16>
    %cst_51 = arith.constant dense<0.000000e+00> : vector<8x64xf32>
    %152 = tpu.matmul %150, %151, %cst_51 {dimension_numbers = #tpu.dot_dimension_numbers<[1], [0], [0], [1], [0, 0, 1, 1], [], []>} : vector<8x128xbf16>, vector<128x64xbf16>, vector<8x64xf32> -> vector<8x64xf32>
    %c0_52 = arith.constant 0 : index
    %c0_53 = arith.constant 0 : index
    %153 = vector.load %arg11[%c0_52, %c0_53] : memref<1x64xf32, #tpu.memory_space<vmem>>, vector<1x64xf32>
    %154 = vector.broadcast %153 : vector<1x64xf32> to vector<8x64xf32>
    %155 = arith.addf %152, %154 : vector<8x64xf32>
    %156 = arith.addf %155, %130 : vector<8x64xf32>
    %c0_54 = arith.constant 0 : index
    %c0_55 = arith.constant 0 : index
    %157 = vector.load %arg12[%c0_54, %c0_55] : memref<1x64xf32, #tpu.memory_space<vmem>>, vector<1x64xf32>
    %c0_56 = arith.constant 0 : index
    %c0_57 = arith.constant 0 : index
    %158 = vector.load %arg13[%c0_56, %c0_57] : memref<1x64xf32, #tpu.memory_space<vmem>>, vector<1x64xf32>
    %cst_58 = arith.constant dense<0.000000e+00> : vector<8xf32>
    %159 = vector.multi_reduction <add>, %156, %cst_58 [1] : vector<8x64xf32> to vector<8xf32>
    %160 = vector.shape_cast %159 : vector<8xf32> to vector<8x1xf32>
    %cst_59 = arith.constant 6.400000e+01 : f32
    %161 = vector.broadcast %cst_59 : f32 to vector<8x1xf32>
    %162 = arith.divf %160, %161 : vector<8x1xf32>
    %163 = vector.broadcast %162 : vector<8x1xf32> to vector<8x64xf32>
    %164 = arith.subf %156, %163 : vector<8x64xf32>
    %165 = arith.mulf %164, %164 : vector<8x64xf32>
    %cst_60 = arith.constant dense<0.000000e+00> : vector<8xf32>
    %166 = vector.multi_reduction <add>, %165, %cst_60 [1] : vector<8x64xf32> to vector<8xf32>
    %167 = vector.shape_cast %166 : vector<8xf32> to vector<8x1xf32>
    %cst_61 = arith.constant 6.400000e+01 : f32
    %168 = vector.broadcast %cst_61 : f32 to vector<8x1xf32>
    %169 = arith.divf %167, %168 : vector<8x1xf32>
    %cst_62 = arith.constant 9.99999996E-13 : f32
    %170 = vector.broadcast %cst_62 : f32 to vector<8x1xf32>
    %171 = arith.addf %169, %170 : vector<8x1xf32>
    %172 = math.rsqrt %171 : vector<8x1xf32>
    %173 = vector.broadcast %172 : vector<8x1xf32> to vector<8x64xf32>
    %174 = arith.mulf %164, %173 : vector<8x64xf32>
    %175 = vector.broadcast %157 : vector<1x64xf32> to vector<8x64xf32>
    %176 = arith.mulf %174, %175 : vector<8x64xf32>
    %177 = vector.broadcast %158 : vector<1x64xf32> to vector<8x64xf32>
    %178 = arith.addf %176, %177 : vector<8x64xf32>
    %c0_63 = arith.constant 0 : index
    %c0_64 = arith.constant 0 : index
    %179 = vector.load %arg14[%c0_63, %c0_64] : memref<8x64xf32, #tpu.memory_space<vmem>>, vector<8x64xf32>
    tpu.vector_store %arg14[%c0_63, %c0_64], %178 {strides = array<i32>} : memref<8x64xf32, #tpu.memory_space<vmem>>, vector<8x64xf32>,
    return
  }
  func.func @transform_0(%arg0: i32) -> (i32, i32) {
    %c0_i32 = arith.constant 0 : i32
    %c0_i32_0 = arith.constant 0 : i32
    return %arg0, %c0_i32 : i32, i32
  }
  func.func @transform_1(%arg0: i32) -> (i32, i32, i32) {
    %c0_i32 = arith.constant 0 : i32
    %c0_i32_0 = arith.constant 0 : i32
    %c0_i32_1 = arith.constant 0 : i32
    return %arg0, %c0_i32, %c0_i32_0 : i32, i32, i32
  }
  func.func @transform_2(%arg0: i32) -> (i32, i32) {
    %c0_i32 = arith.constant 0 : i32
    %c0_i32_0 = arith.constant 0 : i32
    %c0_i32_1 = arith.constant 0 : i32
    return %c0_i32, %c0_i32_0 : i32, i32
  }
  func.func @transform_3(%arg0: i32) -> (i32, i32) {
    %c0_i32 = arith.constant 0 : i32
    %c0_i32_0 = arith.constant 0 : i32
    %c0_i32_1 = arith.constant 0 : i32
    return %c0_i32, %c0_i32_0 : i32, i32
  }
  func.func @transform_4(%arg0: i32) -> (i32, i32) {
    %c0_i32 = arith.constant 0 : i32
    %c0_i32_0 = arith.constant 0 : i32
    %c0_i32_1 = arith.constant 0 : i32
    return %c0_i32, %c0_i32_0 : i32, i32
  }
  func.func @transform_5(%arg0: i32) -> (i32, i32) {
    %c0_i32 = arith.constant 0 : i32
    %c0_i32_0 = arith.constant 0 : i32
    %c0_i32_1 = arith.constant 0 : i32
    return %c0_i32, %c0_i32_0 : i32, i32
  }
  func.func @transform_6(%arg0: i32) -> (i32, i32) {
    %c0_i32 = arith.constant 0 : i32
    %c0_i32_0 = arith.constant 0 : i32
    %c0_i32_1 = arith.constant 0 : i32
    return %c0_i32, %c0_i32_0 : i32, i32
  }
  func.func @transform_7(%arg0: i32) -> (i32, i32) {
    %c0_i32 = arith.constant 0 : i32
    %c0_i32_0 = arith.constant 0 : i32
    %c0_i32_1 = arith.constant 0 : i32
    return %c0_i32, %c0_i32_0 : i32, i32
  }
  func.func @transform_8(%arg0: i32) -> (i32, i32) {
    %c0_i32 = arith.constant 0 : i32
    %c0_i32_0 = arith.constant 0 : i32
    %c0_i32_1 = arith.constant 0 : i32
    return %c0_i32, %c0_i32_0 : i32, i32
  }
  func.func @transform_9(%arg0: i32) -> (i32, i32) {
    %c0_i32 = arith.constant 0 : i32
    %c0_i32_0 = arith.constant 0 : i32
    %c0_i32_1 = arith.constant 0 : i32
    return %c0_i32, %c0_i32_0 : i32, i32
  }
  func.func @transform_10(%arg0: i32) -> (i32, i32) {
    %c0_i32 = arith.constant 0 : i32
    %c0_i32_0 = arith.constant 0 : i32
    %c0_i32_1 = arith.constant 0 : i32
    return %c0_i32, %c0_i32_0 : i32, i32
  }
  func.func @transform_11(%arg0: i32) -> (i32, i32) {
    %c0_i32 = arith.constant 0 : i32
    %c0_i32_0 = arith.constant 0 : i32
    %c0_i32_1 = arith.constant 0 : i32
    return %c0_i32, %c0_i32_0 : i32, i32
  }
  func.func @transform_12(%arg0: i32) -> (i32, i32) {
    %c0_i32 = arith.constant 0 : i32
    %c0_i32_0 = arith.constant 0 : i32
    %c0_i32_1 = arith.constant 0 : i32
    return %c0_i32, %c0_i32_0 : i32, i32
  }
  func.func @transform_13(%arg0: i32) -> (i32, i32) {
    %c0_i32 = arith.constant 0 : i32
    %c0_i32_0 = arith.constant 0 : i32
    return %arg0, %c0_i32 : i32, i32
  }
}

</mosaic_0001>

<llo_original>
// kernel: _lambda_.5
$region0: #{_lambda_.5}
  #allocation0 [shape = 'u32[]', space=smem, size = 0x4, offset = 0x4, fixed_abs, tag = 'smem constant byte address 0x4 - core index']
  #allocation1 [shape = 'u32[144,128]{1,0:T(1,128)}', space=vmem, size = 0x12000, scoped, tag = 'internal scratch']
  %s0 = inlined_call_operand.vmem [shape: f32[16,64], index: 0, kind: input, shape index: {}]
  %s1 = inlined_call_operand.vmem [shape: bf16[64,128], index: 1, kind: input, shape index: {}]
  %s2 = inlined_call_operand.vmem [shape: f32[1,128], index: 2, kind: input, shape index: {}]
  %s3 = inlined_call_operand.hbm [shape: f32[2,128], index: 3, kind: output, shape index: {}]
  %s4 = sld [smem:[#allocation0]]
  $region22: #{_lambda_.5} parent=0
    _
  %s6 = ssub.s32 1, %s4
  %s7 = scalar_select 0, %s6, %s4
  $region1: #{_lambda_.5} parent=0
    #allocation2 [shape = 'u8[1024]{0}', space=vmem, size = 0x400, scoped, tag = 'output window, operand 0, single buffered']
    #allocation3 [shape = 's32[1]{0}', space=sflag, size = 0x4, scoped, tag = 'scoped memory for _lambda_.5']
    %8 = vsyncpa [#allocation3], 0
    // Predicated region
    $region2: #{_lambda_.5} parent=1 // pred_check
      _
    $region3: #{_lambda_.5} parent=1 // pred_check_branch
      %10 = sbr.rel (0) target = $region5
    $region4: #{_lambda_.5} parent=1 // pred_region
      _
    $region5: #{_lambda_.5} parent=1 // pred_fallthru
      _
    // Predicated region
    $region6: #{_lambda_.5} parent=1 // pred_check
      _
    $region7: #{_lambda_.5} parent=1 // pred_check_branch
      %12 = sbr.rel (0) target = $region9
    $region8: #{_lambda_.5} parent=1 // pred_region
      _
    $region9: #{_lambda_.5} parent=1 // pred_fallthru
      _
    // Predicated region
    $region10: #{_lambda_.5} parent=1 // pred_check
      _
    $region11: #{_lambda_.5} parent=1 // pred_check_branch
      %14 = sbr.rel (0) target = $region13
    $region12: #{_lambda_.5} parent=1 // pred_region
      _
    $region13: #{_lambda_.5} parent=1 // pred_fallthru
      _
    %v16 = vld [vmem:[%s0] sm:$0xff]
    %v17 = vld [vmem:[%s0 + $0x8] sm:$0xff]
    %vm18 = vcmask 523264
    %v19 = vsel %vm18, %v16, 0.0
    %v20 = vrot.slane %v19, 4
    %v21 = vadd.f32 %v19, %v20
    %v22 = vrot.slane %v21, 2
    %v23 = vadd.f32 %v21, %v22
    %v24 = vrot.slane %v23, 1
    %v25 = vadd.f32 %v23, %v24
    %v26 = vsel %vm18, %v17, 0.0
    %v27 = vrot.slane %v26, 4
    %v28 = vadd.f32 %v26, %v27
    %v29 = vrot.slane %v28, 2
    %v30 = vadd.f32 %v28, %v29
    %v31 = vrot.slane %v30, 1
    %v32 = vadd.f32 %v30, %v31
    %vm33 = vcmask 1040384
    %v34 = vsel %vm33, %v25, %v32
    %v35 = vpack.c.bf16 %v34, %v34
    %v36 = vld [vmem:[%s1] sm:$0xf]
    %v37 = vld [vmem:[%s1 + $0x4] sm:$0xf]
    %v38 = vld [vmem:[%s1 + $0x8] sm:$0xf]
    %v39 = vld [vmem:[%s1 + $0xc] sm:$0xf]
    %v40 = vld [vmem:[%s1 + $0x10] sm:$0xf]
    %v41 = vld [vmem:[%s1 + $0x14] sm:$0xf]
    %v42 = vld [vmem:[%s1 + $0x18] sm:$0xf]
    %v43 = vld [vmem:[%s1 + $0x1c] sm:$0xf]
    %v44 = vld [vmem:[%s2] sm:$0x1]
    %v46 = vlaneseq
    %v47 = vshrl.u32 %v46, 7
    %v48 = vsub.s32 0, %v47
    %v49 = vrot.slane %v44, %v48
    %v59 = vunpack.c.l.b16 %v36
    %v60 = vunpack.c.l.b16 %v37
    %v61 = vunpack.c.l.b16 %v38
    %v62 = vunpack.c.l.b16 %v39
    %v63 = vunpack.c.l.b16 %v40
    %v64 = vunpack.c.l.b16 %v41
    %v65 = vunpack.c.l.b16 %v42
    %v66 = vunpack.c.l.b16 %v43
    %v67 = vpack.c.b16 %v60, %v59
    %v68 = vpack.c.b16 %v62, %v61
    %v69 = vpack.c.b16 %v64, %v63
    %v70 = vpack.c.b16 %v66, %v65
    %v76 = vsel %vm18, %v35, 0
    %78 = vmatprep.subr.bf16.mxu0 0
    %79 = vmatpush1.bf16.msra.mxu0 %v67
    %80 = vmatprep.subr.bf16.mxu0 0
    %81 = vmatpush1.bf16.msra.mxu0 %v68
    %82 = vmatprep.subr.bf16.mxu0 0
    %83 = vmatpush1.bf16.msra.mxu0 %v69
    %84 = vmatprep.subr.bf16.mxu0 0
    %85 = vmatpush1.bf16.msra.mxu0 %v70
    %86 = vmatprep.subr.bf16.mxu0 0
    %87 = vmatpush1.bf16.msra.mxu0 0
    %88 = vmatprep.subr.bf16.mxu0 0
    %89 = vmatpush1.bf16.msra.mxu0 0
    %90 = vmatprep.subr.bf16.mxu0 0
    %91 = vmatpush1.bf16.msra.mxu0 0
    %92 = vmatprep.subr.bf16.mxu0 0
    %93 = vmatpush1.bf16.msra.mxu0 0
    %94 = vmatprep.subr.bf16.mxu0 0
    %95 = vmatpush1.bf16.msra.mxu0 0
    %96 = vmatprep.subr.bf16.mxu0 0
    %97 = vmatpush1.bf16.msra.mxu0 0
    %98 = vmatprep.subr.bf16.mxu0 0
    %99 = vmatpush1.bf16.msra.mxu0 0
    %100 = vmatprep.subr.bf16.mxu0 0
    %101 = vmatpush1.bf16.msra.mxu0 0
    %102 = vmatprep.subr.bf16.mxu0 0
    %103 = vmatpush1.bf16.msra.mxu0 0
    %104 = vmatprep.subr.bf16.mxu0 0
    %105 = vmatpush1.bf16.msra.mxu0 0
    %106 = vmatprep.subr.bf16.mxu0 0
    %107 = vmatpush1.bf16.msra.mxu0 0
    %108 = vmatprep.subr.bf16.mxu0 0
    %109 = vmatpush1.bf16.msra.mxu0 0
    %110 = vmatprep.mubr.bf16.mxu0 0
    %111 = vmatmul.mubr.bf16.gmra.mrb[0].mxu0 %v76
    %v112 = vpop.f32.mrb[0].mxu0
    %v113 = vadd.f32 %v49, %v112
    %v114 = vpop.f32.mrb[0].mxu0
    %v115 = vpop.f32.mrb[0].mxu0
    %v116 = vpop.f32.mrb[0].mxu0
    %117 = vdwg.mxu0
    %118 = vst [vmem:[#allocation2] sm:$0x3] %v113
    // Predicated region
    $region14: #{_lambda_.5} parent=1 // pred_check
      _
    $region15: #{_lambda_.5} parent=1 // pred_check_branch
      %120 = sbr.rel (0) target = $region17
    $region16: #{_lambda_.5} parent=1 // pred_region
      %s122 = ssub.s32 32, 32
      %123 = vsyncadd [#allocation3], %s122
      %s125 = sshll.u32 [#allocation2], 4
      %s126 = int_to_ptr.vmem [resolvable:$true] %s125
      %128 = dma.vmem_to_hbm [thread:$0]  %s126, 32, %s3, [#allocation3]
    $region17: #{_lambda_.5} parent=1 // pred_fallthru
      _
    // Predicated region
    $region18: #{_lambda_.5} parent=1 // pred_check
      _
    $region19: #{_lambda_.5} parent=1 // pred_check_branch
      %130 = sbr.rel (0) target = $region21
    $region20: #{_lambda_.5} parent=1 // pred_region
      %131 = dma.done [#allocation3], 32
    $region21: #{_lambda_.5} parent=1 // pred_fallthru
      _
    %132 = vsyncpa [#allocation3], 1

// kernel: _lambda_.3
$region0: #{_lambda_.3}
  #allocation0 [shape = 'u32[]', space=smem, size = 0x4, offset = 0x4, fixed_abs, tag = 'smem constant byte address 0x4 - core index']
  #allocation1 [shape = 'u32[144,128]{1,0:T(1,128)}', space=vmem, size = 0x12000, scoped, tag = 'internal scratch']
  %s0 = inlined_call_operand.vmem [shape: f32[16,64], index: 0, kind: input, shape index: {}]
  %s1 = inlined_call_operand.vmem [shape: f32[2,1,8], index: 1, kind: input, shape index: {}]
  %s2 = inlined_call_operand.vmem [shape: bf16[64,192], index: 2, kind: input, shape index: {}]
  %s3 = inlined_call_operand.vmem [shape: f32[1,192], index: 3, kind: input, shape index: {}]
  %s4 = inlined_call_operand.vmem [shape: bf16[64,64], index: 4, kind: input, shape index: {}]
  %s5 = inlined_call_operand.vmem [shape: f32[1,64], index: 5, kind: input, shape index: {}, may-alias: {5,11}]
  %s6 = inlined_call_operand.vmem [shape: f32[1,64], index: 6, kind: input, shape index: {}, may-alias: {6,10,12}]
  %s7 = inlined_call_operand.vmem [shape: bf16[64,128], index: 7, kind: input, shape index: {}]
  %s8 = inlined_call_operand.vmem [shape: f32[1,128], index: 8, kind: input, shape index: {}]
  %s9 = inlined_call_operand.vmem [shape: bf16[128,64], index: 9, kind: input, shape index: {}]
  %s10 = inlined_call_operand.vmem [shape: f32[1,64], index: 10, kind: input, shape index: {}, may-alias: {6,10,12}]
  %s11 = inlined_call_operand.vmem [shape: f32[1,64], index: 11, kind: input, shape index: {}, may-alias: {5,11}]
  %s12 = inlined_call_operand.vmem [shape: f32[1,64], index: 12, kind: input, shape index: {}, may-alias: {6,10,12}]
  %s13 = inlined_call_operand.vmem [shape: f32[16,64], index: 13, kind: output, shape index: {}]
  %s14 = sld [smem:[#allocation0]]
  $region85: #{_lambda_.3} parent=0
    _
  %s16 = ssub.s32 1, %s14
  %s17 = scalar_select 0, %s16, %s14
  loop: start=0, step=1, limit=4
  $region2: #{_lambda_.3} parent=0 // loop_pre_header
    _
  $region3: #{_lambda_.3} parent=0 // loop_header
    %s19 = sphi 0, %s23
    %p20 = scmp.ge.s32.totalorder %s19, 4
    %s29 = sphi 0, %s31
    %s32 = sphi 0, %s29
    %s33 = sphi 0, %s32
    %s49 = sphi 0, %s33
    %s55 = sphi 0, %s57
    %s58 = sphi 0, %s55
    %s59 = sphi 0, %s58
    %s75 = sphi 0, %s59
    %s79 = sphi 0, %s79
    %s81 = sphi 0, %s79
    %s82 = sphi 0, %s81
    %s96 = sphi 0, %s82
    %s100 = sphi 0, %s100
    %s102 = sphi 0, %s100
    %s103 = sphi 0, %s102
    %s117 = sphi 0, %s103
    %s121 = sphi 0, %s121
    %s123 = sphi 0, %s121
    %s124 = sphi 0, %s123
    %s138 = sphi 0, %s124
    %s142 = sphi 0, %s142
    %s144 = sphi 0, %s142
    %s145 = sphi 0, %s144
    %s159 = sphi 0, %s145
    %s163 = sphi 0, %s163
    %s165 = sphi 0, %s163
    %s166 = sphi 0, %s165
    %s180 = sphi 0, %s166
    %s184 = sphi 0, %s184
    %s186 = sphi 0, %s184
    %s187 = sphi 0, %s186
    %s201 = sphi 0, %s187
    %s205 = sphi 0, %s205
    %s207 = sphi 0, %s205
    %s208 = sphi 0, %s207
    %s222 = sphi 0, %s208
    %s226 = sphi 0, %s226
    %s228 = sphi 0, %s226
    %s229 = sphi 0, %s228
    %s243 = sphi 0, %s229
    %s247 = sphi 0, %s247
    %s249 = sphi 0, %s247
    %s250 = sphi 0, %s249
    %s264 = sphi 0, %s250
    %s268 = sphi 0, %s268
    %s270 = sphi 0, %s268
    %s271 = sphi 0, %s270
    %s285 = sphi 0, %s271
    %s289 = sphi 0, %s289
    %s291 = sphi 0, %s289
    %s292 = sphi 0, %s291
    %s306 = sphi 0, %s292
    %s312 = sphi 0, %s314
    %s315 = sphi 0, %s312
    %s316 = sphi 0, %s315
    %s332 = sphi 0, %s316
  $region4: #{_lambda_.3} parent=0 // loop_header_branch
    %22 = sbr.rel (%p20) target = $region8
  $region5: #{_lambda_.3} parent=0 // loop_body
    %s24 = ssub.s32 %s19, 1
    %s25 = ssub.s32 %s19, 2
    %s26 = sadd.s32 %s19, 1
    %s27 = ssub.s32 %s19, %s26
    %p28 = scmp.eq.s32.totalorder %s27, 0
    %s30 = sadd.s32 %s29, 1
    %s31 = scalar_select %p28, %s29, %s30
    %p34 = pneg %p28
    %p35 = scmp.eq.s32.totalorder %s19, 1
    %p36 = por %p34, %p35
    %p37 = scmp.ne.s32.totalorder %s29, %s32
    %p38 = scmp.eq.s32.totalorder %s19, 0
    %p39 = por %p37, %p38
    %p40 = scmp.ne.s32.totalorder %s29, %s32
    %p41 = scmp.eq.s32.totalorder %s24, 1
    %p42 = por %p40, %p41
    %p43 = scmp.ne.s32.totalorder %s32, %s33
    %p44 = scmp.eq.s32.totalorder %s24, 0
    %p45 = por %p43, %p44
    %p46 = scmp.ne.s32.totalorder %s32, %s33
    %p47 = scmp.eq.s32.totalorder %s25, 1
    %p48 = por %p46, %p47
    %p50 = scmp.ne.s32.totalorder %s33, %s49
    %p51 = scmp.eq.s32.totalorder %s25, 0
    %p52 = por %p50, %p51
    %s53 = ssub.s32 %s19, %s26
    %p54 = scmp.eq.s32.totalorder %s53, 0
    %s56 = sadd.s32 %s55, 1
    %s57 = scalar_select %p54, %s55, %s56
    %p60 = pneg %p54
    %p61 = scmp.eq.s32.totalorder %s19, 1
    %p62 = por %p60, %p61
    %p63 = scmp.ne.s32.totalorder %s55, %s58
    %p64 = scmp.eq.s32.totalorder %s19, 0
    %p65 = por %p63, %p64
    %p66 = scmp.ne.s32.totalorder %s55, %s58
    %p67 = scmp.eq.s32.totalorder %s24, 1
    %p68 = por %p66, %p67
    %p69 = scmp.ne.s32.totalorder %s58, %s59
    %p70 = scmp.eq.s32.totalorder %s24, 0
    %p71 = por %p69, %p70
    %p72 = scmp.ne.s32.totalorder %s58, %s59
    %p73 = scmp.eq.s32.totalorder %s25, 1
    %p74 = por %p72, %p73
    %p76 = scmp.ne.s32.totalorder %s59, %s75
    %p77 = scmp.eq.s32.totalorder %s25, 0
    %p78 = por %p76, %p77
    %s80 = sadd.s32 %s79, 1
    %p83 = scmp.eq.s32.totalorder %s19, 1
    %p84 = scmp.ne.s32.totalorder %s79, %s81
    %p85 = scmp.eq.s32.totalorder %s19, 0
    %p86 = por %p84, %p85
    %p87 = scmp.ne.s32.totalorder %s79, %s81
    %p88 = scmp.eq.s32.totalorder %s24, 1
    %p89 = por %p87, %p88
    %p90 = scmp.ne.s32.totalorder %s81, %s82
    %p91 = scmp.eq.s32.totalorder %s24, 0
    %p92 = por %p90, %p91
    %p93 = scmp.ne.s32.totalorder %s81, %s82
    %p94 = scmp.eq.s32.totalorder %s25, 1
    %p95 = por %p93, %p94
    %p97 = scmp.ne.s32.totalorder %s82, %s96
    %p98 = scmp.eq.s32.totalorder %s25, 0
    %p99 = por %p97, %p98
    %s101 = sadd.s32 %s100, 1
    %p104 = scmp.eq.s32.totalorder %s19, 1
    %p105 = scmp.ne.s32.totalorder %s100, %s102
    %p106 = scmp.eq.s32.totalorder %s19, 0
    %p107 = por %p105, %p106
    %p108 = scmp.ne.s32.totalorder %s100, %s102
    %p109 = scmp.eq.s32.totalorder %s24, 1
    %p110 = por %p108, %p109
    %p111 = scmp.ne.s32.totalorder %s102, %s103
    %p112 = scmp.eq.s32.totalorder %s24, 0
    %p113 = por %p111, %p112
    %p114 = scmp.ne.s32.totalorder %s102, %s103
    %p115 = scmp.eq.s32.totalorder %s25, 1
    %p116 = por %p114, %p115
    %p118 = scmp.ne.s32.totalorder %s103, %s117
    %p119 = scmp.eq.s32.totalorder %s25, 0
    %p120 = por %p118, %p119
    %s122 = sadd.s32 %s121, 1
    %p125 = scmp.eq.s32.totalorder %s19, 1
    %p126 = scmp.ne.s32.totalorder %s121, %s123
    %p127 = scmp.eq.s32.totalorder %s19, 0
    %p128 = por %p126, %p127
    %p129 = scmp.ne.s32.totalorder %s121, %s123
    %p130 = scmp.eq.s32.totalorder %s24, 1
    %p131 = por %p129, %p130
    %p132 = scmp.ne.s32.totalorder %s123, %s124
    %p133 = scmp.eq.s32.totalorder %s24, 0
    %p134 = por %p132, %p133
    %p135 = scmp.ne.s32.totalorder %s123, %s124
    %p136 = scmp.eq.s32.totalorder %s25, 1
    %p137 = por %p135, %p136
    %p139 = scmp.ne.s32.totalorder %s124, %s138
    %p140 = scmp.eq.s32.totalorder %s25, 0
    %p141 = por %p139, %p140
    %s143 = sadd.s32 %s142, 1
    %p146 = scmp.eq.s32.totalorder %s19, 1
    %p147 = scmp.ne.s32.totalorder %s142, %s144
    %p148 = scmp.eq.s32.totalorder %s19, 0
    %p149 = por %p147, %p148
    %p150 = scmp.ne.s32.totalorder %s142, %s144
    %p151 = scmp.eq.s32.totalorder %s24, 1
    %p152 = por %p150, %p151
    %p153 = scmp.ne.s32.totalorder %s144, %s145
    %p154 = scmp.eq.s32.totalorder %s24, 0
    %p155 = por %p153, %p154
    %p156 = scmp.ne.s32.totalorder %s144, %s145
    %p157 = scmp.eq.s32.totalorder %s25, 1
    %p158 = por %p156, %p157
    %p160 = scmp.ne.s32.totalorder %s145, %s159
    %p161 = scmp.eq.s32.totalorder %s25, 0
    %p162 = por %p160, %p161
    %s164 = sadd.s32 %s163, 1
    %p167 = scmp.eq.s32.totalorder %s19, 1
    %p168 = scmp.ne.s32.totalorder %s163, %s165
    %p169 = scmp.eq.s32.totalorder %s19, 0
    %p170 = por %p168, %p169
    %p171 = scmp.ne.s32.totalorder %s163, %s165
    %p172 = scmp.eq.s32.totalorder %s24, 1
    %p173 = por %p171, %p172
    %p174 = scmp.ne.s32.totalorder %s165, %s166
    %p175 = scmp.eq.s32.totalorder %s24, 0
    %p176 = por %p174, %p175
    %p177 = scmp.ne.s32.totalorder %s165, %s166
    %p178 = scmp.eq.s32.totalorder %s25, 1
    %p179 = por %p177, %p178
    %p181 = scmp.ne.s32.totalorder %s166, %s180
    %p182 = scmp.eq.s32.totalorder %s25, 0
    %p183 = por %p181, %p182
    %s185 = sadd.s32 %s184, 1
    %p188 = scmp.eq.s32.totalorder %s19, 1
    %p189 = scmp.ne.s32.totalorder %s184, %s186
    %p190 = scmp.eq.s32.totalorder %s19, 0
    %p191 = por %p189, %p190
    %p192 = scmp.ne.s32.totalorder %s184, %s186
    %p193 = scmp.eq.s32.totalorder %s24, 1
    %p194 = por %p192, %p193
    %p195 = scmp.ne.s32.totalorder %s186, %s187
    %p196 = scmp.eq.s32.totalorder %s24, 0
    %p197 = por %p195, %p196
    %p198 = scmp.ne.s32.totalorder %s186, %s187
    %p199 = scmp.eq.s32.totalorder %s25, 1
    %p200 = por %p198, %p199
    %p202 = scmp.ne.s32.totalorder %s187, %s201
    %p203 = scmp.eq.s32.totalorder %s25, 0
    %p204 = por %p202, %p203
    %s206 = sadd.s32 %s205, 1
    %p209 = scmp.eq.s32.totalorder %s19, 1
    %p210 = scmp.ne.s32.totalorder %s205, %s207
    %p211 = scmp.eq.s32.totalorder %s19, 0
    %p212 = por %p210, %p211
    %p213 = scmp.ne.s32.totalorder %s205, %s207
    %p214 = scmp.eq.s32.totalorder %s24, 1
    %p215 = por %p213, %p214
    %p216 = scmp.ne.s32.totalorder %s207, %s208
    %p217 = scmp.eq.s32.totalorder %s24, 0
    %p218 = por %p216, %p217
    %p219 = scmp.ne.s32.totalorder %s207, %s208
    %p220 = scmp.eq.s32.totalorder %s25, 1
    %p221 = por %p219, %p220
    %p223 = scmp.ne.s32.totalorder %s208, %s222
    %p224 = scmp.eq.s32.totalorder %s25, 0
    %p225 = por %p223, %p224
    %s227 = sadd.s32 %s226, 1
    %p230 = scmp.eq.s32.totalorder %s19, 1
    %p231 = scmp.ne.s32.totalorder %s226, %s228
    %p232 = scmp.eq.s32.totalorder %s19, 0
    %p233 = por %p231, %p232
    %p234 = scmp.ne.s32.totalorder %s226, %s228
    %p235 = scmp.eq.s32.totalorder %s24, 1
    %p236 = por %p234, %p235
    %p237 = scmp.ne.s32.totalorder %s228, %s229
    %p238 = scmp.eq.s32.totalorder %s24, 0
    %p239 = por %p237, %p238
    %p240 = scmp.ne.s32.totalorder %s228, %s229
    %p241 = scmp.eq.s32.totalorder %s25, 1
    %p242 = por %p240, %p241
    %p244 = scmp.ne.s32.totalorder %s229, %s243
    %p245 = scmp.eq.s32.totalorder %s25, 0
    %p246 = por %p244, %p245
    %s248 = sadd.s32 %s247, 1
    %p251 = scmp.eq.s32.totalorder %s19, 1
    %p252 = scmp.ne.s32.totalorder %s247, %s249
    %p253 = scmp.eq.s32.totalorder %s19, 0
    %p254 = por %p252, %p253
    %p255 = scmp.ne.s32.totalorder %s247, %s249
    %p256 = scmp.eq.s32.totalorder %s24, 1
    %p257 = por %p255, %p256
    %p258 = scmp.ne.s32.totalorder %s249, %s250
    %p259 = scmp.eq.s32.totalorder %s24, 0
    %p260 = por %p258, %p259
    %p261 = scmp.ne.s32.totalorder %s249, %s250
    %p262 = scmp.eq.s32.totalorder %s25, 1
    %p263 = por %p261, %p262
    %p265 = scmp.ne.s32.totalorder %s250, %s264
    %p266 = scmp.eq.s32.totalorder %s25, 0
    %p267 = por %p265, %p266
    %s269 = sadd.s32 %s268, 1
    %p272 = scmp.eq.s32.totalorder %s19, 1
    %p273 = scmp.ne.s32.totalorder %s268, %s270
    %p274 = scmp.eq.s32.totalorder %s19, 0
    %p275 = por %p273, %p274
    %p276 = scmp.ne.s32.totalorder %s268, %s270
    %p277 = scmp.eq.s32.totalorder %s24, 1
    %p278 = por %p276, %p277
    %p279 = scmp.ne.s32.totalorder %s270, %s271
    %p280 = scmp.eq.s32.totalorder %s24, 0
    %p281 = por %p279, %p280
    %p282 = scmp.ne.s32.totalorder %s270, %s271
    %p283 = scmp.eq.s32.totalorder %s25, 1
    %p284 = por %p282, %p283
    %p286 = scmp.ne.s32.totalorder %s271, %s285
    %p287 = scmp.eq.s32.totalorder %s25, 0
    %p288 = por %p286, %p287
    %s290 = sadd.s32 %s289, 1
    %p293 = scmp.eq.s32.totalorder %s19, 1
    %p294 = scmp.ne.s32.totalorder %s289, %s291
    %p295 = scmp.eq.s32.totalorder %s19, 0
    %p296 = por %p294, %p295
    %p297 = scmp.ne.s32.totalorder %s289, %s291
    %p298 = scmp.eq.s32.totalorder %s24, 1
    %p299 = por %p297, %p298
    %p300 = scmp.ne.s32.totalorder %s291, %s292
    %p301 = scmp.eq.s32.totalorder %s24, 0
    %p302 = por %p300, %p301
    %p303 = scmp.ne.s32.totalorder %s291, %s292
    %p304 = scmp.eq.s32.totalorder %s25, 1
    %p305 = por %p303, %p304
    %p307 = scmp.ne.s32.totalorder %s292, %s306
    %p308 = scmp.eq.s32.totalorder %s25, 0
    %p309 = por %p307, %p308
    %s310 = ssub.s32 %s19, %s26
    %p311 = scmp.eq.s32.totalorder %s310, 0
    %s313 = sadd.s32 %s312, 1
    %s314 = scalar_select %p311, %s312, %s313
    %p317 = pneg %p311
    %p318 = scmp.eq.s32.totalorder %s19, 1
    %p319 = por %p317, %p318
    %p320 = scmp.ne.s32.totalorder %s312, %s315
    %p321 = scmp.eq.s32.totalorder %s19, 0
    %p322 = por %p320, %p321
    %p323 = scmp.ne.s32.totalorder %s312, %s315
    %p324 = scmp.eq.s32.totalorder %s24, 1
    %p325 = por %p323, %p324
    %p326 = scmp.ne.s32.totalorder %s315, %s316
    %p327 = scmp.eq.s32.totalorder %s24, 0
    %p328 = por %p326, %p327
    %p329 = scmp.ne.s32.totalorder %s315, %s316
    %p330 = scmp.eq.s32.totalorder %s25, 1
    %p331 = por %p329, %p330
    %p333 = scmp.ne.s32.totalorder %s316, %s332
    %p334 = scmp.eq.s32.totalorder %s25, 0
    %p335 = por %p333, %p334
    %p336 = scmp.le.s32.totalorder 1, %s19
    %p337 = scmp.lt.s32.totalorder %s19, 3
    %p338 = pnand %p336, %p337
    %p339 = pneg %p338
    // Predicated region
    $region9: #{_lambda_.3} parent=5 // pred_check
      _
    $region10: #{_lambda_.3} parent=5 // pred_check_branch
      %341 = sbr.rel (%p338) target = $region12
    $region11: #{_lambda_.3} parent=5 // pred_region
      %s342 = ssub.s32 %s19, 1
      // Predicated region
      $region13: #{_lambda_.3} parent=11 // pred_check
        %p343 = pneg %p92
      $region14: #{_lambda_.3} parent=11 // pred_check_branch
        %345 = sbr.rel (%p343) target = $region16
      $region15: #{_lambda_.3} parent=11 // pred_region
        _
      $region16: #{_lambda_.3} parent=11 // pred_fallthru
        _
      // Predicated region
      $region17: #{_lambda_.3} parent=11 // pred_check
        %p346 = pneg %p113
      $region18: #{_lambda_.3} parent=11 // pred_check_branch
        %348 = sbr.rel (%p346) target = $region20
      $region19: #{_lambda_.3} parent=11 // pred_region
        _
      $region20: #{_lambda_.3} parent=11 // pred_fallthru
        _
      // Predicated region
      $region21: #{_lambda_.3} parent=11 // pred_check
        %p349 = pneg %p134
      $region22: #{_lambda_.3} parent=11 // pred_check_branch
        %351 = sbr.rel (%p349) target = $region24
      $region23: #{_lambda_.3} parent=11 // pred_region
        _
      $region24: #{_lambda_.3} parent=11 // pred_fallthru
        _
      // Predicated region
      $region25: #{_lambda_.3} parent=11 // pred_check
        %p352 = pneg %p155
      $region26: #{_lambda_.3} parent=11 // pred_check_branch
        %354 = sbr.rel (%p352) target = $region28
      $region27: #{_lambda_.3} parent=11 // pred_region
        _
      $region28: #{_lambda_.3} parent=11 // pred_fallthru
        _
      // Predicated region
      $region29: #{_lambda_.3} parent=11 // pred_check
        %p355 = pneg %p176
      $region30: #{_lambda_.3} parent=11 // pred_check_branch
        %357 = sbr.rel (%p355) target = $region32
      $region31: #{_lambda_.3} parent=11 // pred_region
        _
      $region32: #{_lambda_.3} parent=11 // pred_fallthru
        _
      // Predicated region
      $region33: #{_lambda_.3} parent=11 // pred_check
        %p358 = pneg %p197
      $region34: #{_lambda_.3} parent=11 // pred_check_branch
        %360 = sbr.rel (%p358) target = $region36
      $region35: #{_lambda_.3} parent=11 // pred_region
        _
      $region36: #{_lambda_.3} parent=11 // pred_fallthru
        _
      // Predicated region
      $region37: #{_lambda_.3} parent=11 // pred_check
        %p361 = pneg %p218
      $region38: #{_lambda_.3} parent=11 // pred_check_branch
        %363 = sbr.rel (%p361) target = $region40
      $region39: #{_lambda_.3} parent=11 // pred_region
        _
      $region40: #{_lambda_.3} parent=11 // pred_fallthru
        _
      // Predicated region
      $region41: #{_lambda_.3} parent=11 // pred_check
        %p364 = pneg %p239
      $region42: #{_lambda_.3} parent=11 // pred_check_branch
        %366 = sbr.rel (%p364) target = $region44
      $region43: #{_lambda_.3} parent=11 // pred_region
        _
      $region44: #{_lambda_.3} parent=11 // pred_fallthru
        _
      // Predicated region
      $region45: #{_lambda_.3} parent=11 // pred_check
        %p367 = pneg %p260
      $region46: #{_lambda_.3} parent=11 // pred_check_branch
        %369 = sbr.rel (%p367) target = $region48
      $region47: #{_lambda_.3} parent=11 // pred_region
        _
      $region48: #{_lambda_.3} parent=11 // pred_fallthru
        _
      // Predicated region
      $region49: #{_lambda_.3} parent=11 // pred_check
        %p370 = pneg %p281
      $region50: #{_lambda_.3} parent=11 // pred_check_branch
        %372 = sbr.rel (%p370) target = $region52
      $region51: #{_lambda_.3} parent=11 // pred_region
        _
      $region52: #{_lambda_.3} parent=11 // pred_fallthru
        _
      // Predicated region
      $region53: #{_lambda_.3} parent=11 // pred_check
        %p373 = pneg %p302
      $region54: #{_lambda_.3} parent=11 // pred_check_branch
        %375 = sbr.rel (%p373) target = $region56
      $region55: #{_lambda_.3} parent=11 // pred_region
        _
      $region56: #{_lambda_.3} parent=11 // pred_fallthru
        _
    $region12: #{_lambda_.3} parent=5 // pred_fallthru
      _
    %p376 = scmp.lt.s32.totalorder %s19, 2
    // Predicated region
    $region57: #{_lambda_.3} parent=5 // pred_check
      %p377 = pneg %p376
    $region58: #{_lambda_.3} parent=5 // pred_check_branch
      %379 = sbr.rel (%p377) target = $region60
    $region59: #{_lambda_.3} parent=5 // pred_region
      // Predicated region
      $region61: #{_lambda_.3} parent=59 // pred_check
        %p380 = pneg %p39
      $region62: #{_lambda_.3} parent=59 // pred_check_branch
        %382 = sbr.rel (%p380) target = $region64
      $region63: #{_lambda_.3} parent=59 // pred_region
        %p383 = scmp.lt.s32.totalorder %s19, 1
        %s384 = scalar_select %p383, %s19, 1
        %s385 = smul.addr %s384, 8
        %s386 = scalar_lea.vmem %s0, %s385
      $region64: #{_lambda_.3} parent=59 // pred_fallthru
        _
      // Predicated region
      $region65: #{_lambda_.3} parent=59 // pred_check
        %p387 = pneg %p65
      $region66: #{_lambda_.3} parent=59 // pred_check_branch
        %389 = sbr.rel (%p387) target = $region68
      $region67: #{_lambda_.3} parent=59 // pred_region
        %p390 = scmp.lt.s32.totalorder %s19, 1
        %s391 = scalar_select %p390, %s19, 1
        %s392 = scalar_lea.vmem %s1, %s391
      $region68: #{_lambda_.3} parent=59 // pred_fallthru
        _
    $region60: #{_lambda_.3} parent=5 // pred_fallthru
      _
    %p393 = scmp.le.s32.totalorder 1, %s19
    %p394 = scmp.lt.s32.totalorder %s19, 3
    %p395 = pnand %p393, %p394
    %p396 = pneg %p395
    // Predicated region
    $region69: #{_lambda_.3} parent=5 // pred_check
      _
    $region70: #{_lambda_.3} parent=5 // pred_check_branch
      %398 = sbr.rel (%p395) target = $region72
    $region71: #{_lambda_.3} parent=5 // pred_region
      %s399 = ssub.s32 %s19, 1
      %p400 = scmp.lt.s32.totalorder %s24, 1
      %s401 = scalar_select %p400, %s24, 1
      %s402 = smul.addr %s401, 8
      %s403 = scalar_lea.vmem %s0, %s402
      %p404 = pneg %p45
      %p405 = pneg %p42
      %p406 = scmp.lt.s32.totalorder %s24, 1
      %s407 = scalar_select %p406, %s24, 1
      %s408 = scalar_lea.vmem %s1, %s407
      %p409 = pneg %p71
      %p410 = pneg %p68
      %p411 = pneg %p92
      %p412 = pneg %p89
      %p413 = pneg %p113
      %p414 = pneg %p110
      %p415 = pneg %p134
      %p416 = pneg %p131
      %p417 = pneg %p155
      %p418 = pneg %p152
      %p419 = pneg %p176
      %p420 = pneg %p173
      %p421 = pneg %p197
      %p422 = pneg %p194
      %p423 = pneg %p218
      %p424 = pneg %p215
      %p425 = pneg %p239
      %p426 = pneg %p236
      %p427 = pneg %p260
      %p428 = pneg %p257
      %p429 = pneg %p281
      %p430 = pneg %p278
      %p431 = pneg %p302
      %p432 = pneg %p299
      %p433 = pneg %p328
      %p434 = pneg %p325
      %p435 = scmp.lt.s32.totalorder %s24, 1
      %s436 = scalar_select %p435, %s24, 1
      %s437 = smul.addr %s436, 8
      %s438 = scalar_lea.vmem %s13, %s437
      %p439 = scmp.lt.s32.totalorder %s24, 1
      %s440 = scalar_select %p439, %s24, 1
      %s441 = smul.addr %s440, 8
      %s442 = scalar_lea.vmem %s0, %s441
      %p443 = scmp.lt.s32.totalorder %s24, 1
      %s444 = scalar_select %p443, %s24, 1
      %s445 = scalar_lea.vmem %s1, %s444
      %p446 = scmp.lt.s32.totalorder %s24, 1
      %s447 = scalar_select %p446, %s24, 1
      %s448 = smul.addr %s447, 8
      %s449 = scalar_lea.vmem %s13, %s448
      %v451 = vld [vmem:[%s442] sm:$0xff]
      %v452 = vpack.c.bf16 %v451, %v451
      %v453 = vld [vmem:[%s2] sm:$0xff]
      %v454 = vld [vmem:[%s2 + $0x8] sm:$0xff]
      %v455 = vld [vmem:[%s2 + $0x10] sm:$0xff]
      %v456 = vld [vmem:[%s2 + $0x18] sm:$0xff]
      %v457 = vld [vmem:[%s2 + $0x20] sm:$0xff]
      %v458 = vld [vmem:[%s2 + $0x28] sm:$0xff]
      %v459 = vld [vmem:[%s2 + $0x30] sm:$0xff]
      %v460 = vld [vmem:[%s2 + $0x38] sm:$0xff]
      %v461 = vld [vmem:[%s3] sm:$0x3]
      %v463 = vlaneseq
      %v464 = vshrl.u32 %v463, 7
      %v465 = vsub.s32 0, %v464
      %v466 = vrot.slane %v461, %v465
      %v467 = vlaneseq
      %v468 = vshrl.u32 %v467, 7
      %v469 = vsub.s32 1, %v468
      %v470 = vrot.slane %v461, %v469
      %v481 = vunpack.c.l.b16 %v453
      %v482 = vunpack.c.h.b16 %v453
      %v483 = vunpack.c.l.b16 %v454
      %v484 = vunpack.c.h.b16 %v454
      %v485 = vunpack.c.l.b16 %v455
      %v486 = vunpack.c.h.b16 %v455
      %v487 = vunpack.c.l.b16 %v456
      %v488 = vunpack.c.h.b16 %v456
      %v489 = vunpack.c.l.b16 %v457
      %v490 = vunpack.c.h.b16 %v457
      %v491 = vunpack.c.l.b16 %v458
      %v492 = vunpack.c.h.b16 %v458
      %v493 = vunpack.c.l.b16 %v459
      %v494 = vunpack.c.h.b16 %v459
      %v495 = vunpack.c.l.b16 %v460
      %v496 = vunpack.c.h.b16 %v460
      %v497 = vpack.c.b16 %v483, %v481
      %v498 = vpack.c.b16 %v484, %v482
      %v499 = vpack.c.b16 %v487, %v485
      %v500 = vpack.c.b16 %v488, %v486
      %v501 = vpack.c.b16 %v491, %v489
      %v502 = vpack.c.b16 %v492, %v490
      %v503 = vpack.c.b16 %v495, %v493
      %v504 = vpack.c.b16 %v496, %v494
      %vm513 = vcmask 523264
      %v515 = vsel %vm513, %v452, 0
      %517 = vmatprep.subr.bf16.mxu0 %v498
      %518 = vmatpush1.bf16.msra.mxu0 %v497
      %519 = vmatprep.subr.bf16.mxu0 %v500
      %520 = vmatpush1.bf16.msra.mxu0 %v499
      %521 = vmatprep.subr.bf16.mxu0 %v502
      %522 = vmatpush1.bf16.msra.mxu0 %v501
      %523 = vmatprep.subr.bf16.mxu0 %v504
      %524 = vmatpush1.bf16.msra.mxu0 %v503
      %525 = vmatprep.subr.bf16.mxu0 0
      %526 = vmatpush1.bf16.msra.mxu0 0
      %527 = vmatprep.subr.bf16.mxu0 0
      %528 = vmatpush1.bf16.msra.mxu0 0
      %529 = vmatprep.subr.bf16.mxu0 0
      %530 = vmatpush1.bf16.msra.mxu0 0
      %531 = vmatprep.subr.bf16.mxu0 0
      %532 = vmatpush1.bf16.msra.mxu0 0
      %533 = vmatprep.subr.bf16.mxu0 0
      %534 = vmatpush1.bf16.msra.mxu0 0
      %535 = vmatprep.subr.bf16.mxu0 0
      %536 = vmatpush1.bf16.msra.mxu0 0
      %537 = vmatprep.subr.bf16.mxu0 0
      %538 = vmatpush1.bf16.msra.mxu0 0
      %539 = vmatprep.subr.bf16.mxu0 0
      %540 = vmatpush1.bf16.msra.mxu0 0
      %541 = vmatprep.subr.bf16.mxu0 0
      %542 = vmatpush1.bf16.msra.mxu0 0
      %543 = vmatprep.subr.bf16.mxu0 0
      %544 = vmatpush1.bf16.msra.mxu0 0
      %545 = vmatprep.subr.bf16.mxu0 0
      %546 = vmatpush1.bf16.msra.mxu0 0
      %547 = vmatprep.subr.bf16.mxu0 0
      %548 = vmatpush1.bf16.msra.mxu0 0
      %549 = vmatprep.mubr.bf16.mxu0 0
      %550 = vmatmul.mubr.bf16.gmra.mrb[0].mxu0 %v515
      %v551 = vpop.f32.mrb[0].mxu0
      %v552 = vadd.f32 %v466, %v551
      %v553 = vpop.f32.mrb[0].mxu0
      %v554 = vadd.f32 %v470, %v553
      %v555 = vpop.f32.mrb[0].mxu0
      %v556 = vpop.f32.mrb[0].mxu0
      %557 = vdwg.mxu0
      %v558 = vld [vmem:[%s445] sm:$0x1]
      %v559 = vpack.c.bf16 %v552, %v552
      %v560 = vpack.c.bf16 %v554, %v554
      %562 = vrot.lane.b32.xlu0 %v559, 64
      %v563 = vpop.permute.xlu0 %562
      %vm564 = vcmask 130048
      %v566 = vsel %vm564, %v559, 0
      %v569 = vsel %vm564, %v563, 0
      %571 = vmatprep.subr.bf16.mxu0 0
      %572 = vmatpush1.bf16.xpose.msra.mxu0 %v569
      %573 = vmatprep.subr.bf16.mxu0 0
      %574 = vmatpush1.bf16.xpose.msra.mxu0 0
      %575 = vmatprep.subr.bf16.mxu0 0
      %576 = vmatpush1.bf16.xpose.msra.mxu0 0
      %577 = vmatprep.subr.bf16.mxu0 0
      %578 = vmatpush1.bf16.xpose.msra.mxu0 0
      %579 = vmatprep.subr.bf16.mxu0 0
      %580 = vmatpush1.bf16.xpose.msra.mxu0 0
      %581 = vmatprep.subr.bf16.mxu0 0
      %582 = vmatpush1.bf16.xpose.msra.mxu0 0
      %583 = vmatprep.subr.bf16.mxu0 0
      %584 = vmatpush1.bf16.xpose.msra.mxu0 0
      %585 = vmatprep.subr.bf16.mxu0 0
      %586 = vmatpush1.bf16.xpose.msra.mxu0 0
      %587 = vmatprep.subr.bf16.mxu0 0
      %588 = vmatpush1.bf16.xpose.msra.mxu0 0
      %589 = vmatprep.subr.bf16.mxu0 0
      %590 = vmatpush1.bf16.xpose.msra.mxu0 0
      %591 = vmatprep.subr.bf16.mxu0 0
      %592 = vmatpush1.bf16.xpose.msra.mxu0 0
      %593 = vmatprep.subr.bf16.mxu0 0
      %594 = vmatpush1.bf16.xpose.msra.mxu0 0
      %595 = vmatprep.subr.bf16.mxu0 0
      %596 = vmatpush1.bf16.xpose.msra.mxu0 0
      %597 = vmatprep.subr.bf16.mxu0 0
      %598 = vmatpush1.bf16.xpose.msra.mxu0 0
      %599 = vmatprep.subr.bf16.mxu0 0
      %600 = vmatpush1.bf16.xpose.msra.mxu0 0
      %601 = vmatprep.subr.bf16.mxu0 0
      %602 = vmatpush1.bf16.xpose.msra.mxu0 0
      %603 = vmatprep.mubr.bf16.mxu0 0
      %604 = vmatmul.mubr.bf16.gmra.mrb[0].mxu0 %v566
      %v605 = vpop.f32.mrb[0].mxu0
      %v606 = vadd.f32 0.0, %v605
      %v607 = vpop.f32.mrb[0].mxu0
      %v608 = vpop.f32.mrb[0].mxu0
      %v609 = vpop.f32.mrb[0].mxu0
      %610 = vdwg.mxu0
      %v611 = vmul.f32 %v606, 0.25
      %v613 = vlaneseq
      %v614 = vshrl.u32 %v613, 7
      %v615 = vsub.s32 0, %v614
      %v616 = vrot.slane %v558, %v615
      %v618 = vadd.f32 %v611, %v616
      %vm619 = vcmask 64512
      %v620 = vsel %vm619, %v618, -inf
      %621 = vmax.xlane.f32.xlu0 %v620
      %v622 = vpop.xlane.xlu0 %621
      %v623 = vsub.f32 %v618, %v622
      %v624 = vmul.f32 %v623, 1.442695
      %v625 = vpow.pop %v624
      %v626 = vsel %vm619, %v625, 0.0
      %627 = vadd.xlane.f32.xlu0 %v626
      %v628 = vpop.xlane.xlu0 %627
      %v629 = vrcp.pop %v628
      %v630 = vmul.f32 %v625, %v629
      %v631 = vpack.c.bf16 %v630, %v630
      %v633 = vsel %vm619, %v631, 0
      %vm635 = vcmask 1043456
      %v637 = vsel %vm635, %v560, 0
      %639 = vmatprep.subr.bf16.mxu0 0
      %640 = vmatpush1.bf16.msra.mxu0 %v637
      %641 = vmatprep.subr.bf16.mxu0 0
      %642 = vmatpush1.bf16.msra.mxu0 0
      %643 = vmatprep.subr.bf16.mxu0 0
      %644 = vmatpush1.bf16.msra.mxu0 0
      %645 = vmatprep.subr.bf16.mxu0 0
      %646 = vmatpush1.bf16.msra.mxu0 0
      %647 = vmatprep.subr.bf16.mxu0 0
      %648 = vmatpush1.bf16.msra.mxu0 0
      %649 = vmatprep.subr.bf16.mxu0 0
      %650 = vmatpush1.bf16.msra.mxu0 0
      %651 = vmatprep.subr.bf16.mxu0 0
      %652 = vmatpush1.bf16.msra.mxu0 0
      %653 = vmatprep.subr.bf16.mxu0 0
      %654 = vmatpush1.bf16.msra.mxu0 0
      %655 = vmatprep.subr.bf16.mxu0 0
      %656 = vmatpush1.bf16.msra.mxu0 0
      %657 = vmatprep.subr.bf16.mxu0 0
      %658 = vmatpush1.bf16.msra.mxu0 0
      %659 = vmatprep.subr.bf16.mxu0 0
      %660 = vmatpush1.bf16.msra.mxu0 0
      %661 = vmatprep.subr.bf16.mxu0 0
      %662 = vmatpush1.bf16.msra.mxu0 0
      %663 = vmatprep.subr.bf16.mxu0 0
      %664 = vmatpush1.bf16.msra.mxu0 0
      %665 = vmatprep.subr.bf16.mxu0 0
      %666 = vmatpush1.bf16.msra.mxu0 0
      %667 = vmatprep.subr.bf16.mxu0 0
      %668 = vmatpush1.bf16.msra.mxu0 0
      %669 = vmatprep.subr.bf16.mxu0 0
      %670 = vmatpush1.bf16.msra.mxu0 0
      %671 = vmatprep.mubr.bf16.mxu0 0
      %672 = vmatmul.mubr.bf16.gmra.mrb[0].mxu0 %v633
      %v673 = vpop.f32.mrb[0].mxu0
      %v674 = vadd.f32 0.0, %v673
      %v675 = vpop.f32.mrb[0].mxu0
      %v676 = vpop.f32.mrb[0].mxu0
      %v677 = vpop.f32.mrb[0].mxu0
      %678 = vdwg.mxu0
      %679 = vrot.lane.b32.xlu0 %v559, 112
      %v680 = vpop.permute.xlu0 %679
      %681 = vrot.lane.b32.xlu0 %v559, 48
      %v682 = vpop.permute.xlu0 %681
      %v684 = vsel %vm564, %v680, 0
      %v687 = vsel %vm564, %v682, 0
      %689 = vmatprep.subr.bf16.mxu0 0
      %690 = vmatpush1.bf16.xpose.msra.mxu0 %v687
      %691 = vmatprep.subr.bf16.mxu0 0
      %692 = vmatpush1.bf16.xpose.msra.mxu0 0
      %693 = vmatprep.subr.bf16.mxu0 0
      %694 = vmatpush1.bf16.xpose.msra.mxu0 0
      %695 = vmatprep.subr.bf16.mxu0 0
      %696 = vmatpush1.bf16.xpose.msra.mxu0 0
      %697 = vmatprep.subr.bf16.mxu0 0
      %698 = vmatpush1.bf16.xpose.msra.mxu0 0
      %699 = vmatprep.subr.bf16.mxu0 0
      %700 = vmatpush1.bf16.xpose.msra.mxu0 0
      %701 = vmatprep.subr.bf16.mxu0 0
      %702 = vmatpush1.bf16.xpose.msra.mxu0 0
      %703 = vmatprep.subr.bf16.mxu0 0
      %704 = vmatpush1.bf16.xpose.msra.mxu0 0
      %705 = vmatprep.subr.bf16.mxu0 0
      %706 = vmatpush1.bf16.xpose.msra.mxu0 0
      %707 = vmatprep.subr.bf16.mxu0 0
      %708 = vmatpush1.bf16.xpose.msra.mxu0 0
      %709 = vmatprep.subr.bf16.mxu0 0
      %710 = vmatpush1.bf16.xpose.msra.mxu0 0
      %711 = vmatprep.subr.bf16.mxu0 0
      %712 = vmatpush1.bf16.xpose.msra.mxu0 0
      %713 = vmatprep.subr.bf16.mxu0 0
      %714 = vmatpush1.bf16.xpose.msra.mxu0 0
      %715 = vmatprep.subr.bf16.mxu0 0
      %716 = vmatpush1.bf16.xpose.msra.mxu0 0
      %717 = vmatprep.subr.bf16.mxu0 0
      %718 = vmatpush1.bf16.xpose.msra.mxu0 0
      %719 = vmatprep.subr.bf16.mxu0 0
      %720 = vmatpush1.bf16.xpose.msra.mxu0 0
      %721 = vmatprep.mubr.bf16.mxu0 0
      %722 = vmatmul.mubr.bf16.gmra.mrb[0].mxu0 %v684
      %v723 = vpop.f32.mrb[0].mxu0
      %v724 = vadd.f32 0.0, %v723
      %v725 = vpop.f32.mrb[0].mxu0
      %v726 = vpop.f32.mrb[0].mxu0
      %v727 = vpop.f32.mrb[0].mxu0
      %728 = vdwg.mxu0
      %v729 = vmul.f32 %v724, 0.25
      %v730 = vadd.f32 %v729, %v616
      %v731 = vsel %vm619, %v730, -inf
      %732 = vmax.xlane.f32.xlu0 %v731
      %v733 = vpop.xlane.xlu0 %732
      %v734 = vsub.f32 %v730, %v733
      %v735 = vmul.f32 %v734, 1.442695
      %v736 = vpow.pop %v735
      %v737 = vsel %vm619, %v736, 0.0
      %738 = vadd.xlane.f32.xlu0 %v737
      %v739 = vpop.xlane.xlu0 %738
      %v740 = vrcp.pop %v739
      %v741 = vmul.f32 %v736, %v740
      %v742 = vpack.c.bf16 %v741, %v741
      %744 = vrot.lane.b32.xlu0 %v560, 112
      %v745 = vpop.permute.xlu0 %744
      %v747 = vsel %vm619, %v742, 0
      %v750 = vsel %vm635, %v745, 0
      %752 = vmatprep.subr.bf16.mxu0 0
      %753 = vmatpush1.bf16.msra.mxu0 %v750
      %754 = vmatprep.subr.bf16.mxu0 0
      %755 = vmatpush1.bf16.msra.mxu0 0
      %756 = vmatprep.subr.bf16.mxu0 0
      %757 = vmatpush1.bf16.msra.mxu0 0
      %758 = vmatprep.subr.bf16.mxu0 0
      %759 = vmatpush1.bf16.msra.mxu0 0
      %760 = vmatprep.subr.bf16.mxu0 0
      %761 = vmatpush1.bf16.msra.mxu0 0
      %762 = vmatprep.subr.bf16.mxu0 0
      %763 = vmatpush1.bf16.msra.mxu0 0
      %764 = vmatprep.subr.bf16.mxu0 0
      %765 = vmatpush1.bf16.msra.mxu0 0
      %766 = vmatprep.subr.bf16.mxu0 0
      %767 = vmatpush1.bf16.msra.mxu0 0
      %768 = vmatprep.subr.bf16.mxu0 0
      %769 = vmatpush1.bf16.msra.mxu0 0
      %770 = vmatprep.subr.bf16.mxu0 0
      %771 = vmatpush1.bf16.msra.mxu0 0
      %772 = vmatprep.subr.bf16.mxu0 0
      %773 = vmatpush1.bf16.msra.mxu0 0
      %774 = vmatprep.subr.bf16.mxu0 0
      %775 = vmatpush1.bf16.msra.mxu0 0
      %776 = vmatprep.subr.bf16.mxu0 0
      %777 = vmatpush1.bf16.msra.mxu0 0
      %778 = vmatprep.subr.bf16.mxu0 0
      %779 = vmatpush1.bf16.msra.mxu0 0
      %780 = vmatprep.subr.bf16.mxu0 0
      %781 = vmatpush1.bf16.msra.mxu0 0
      %782 = vmatprep.subr.bf16.mxu0 0
      %783 = vmatpush1.bf16.msra.mxu0 0
      %784 = vmatprep.mubr.bf16.mxu0 0
      %785 = vmatmul.mubr.bf16.gmra.mrb[0].mxu0 %v747
      %v786 = vpop.f32.mrb[0].mxu0
      %v787 = vadd.f32 0.0, %v786
      %v788 = vpop.f32.mrb[0].mxu0
      %v789 = vpop.f32.mrb[0].mxu0
      %v790 = vpop.f32.mrb[0].mxu0
      %791 = vdwg.mxu0
      %792 = vrot.lane.b32.xlu0 %v559, 96
      %v793 = vpop.permute.xlu0 %792
      %794 = vrot.lane.b32.xlu0 %v559, 32
      %v795 = vpop.permute.xlu0 %794
      %v797 = vsel %vm564, %v793, 0
      %v800 = vsel %vm564, %v795, 0
      %802 = vmatprep.subr.bf16.mxu0 0
      %803 = vmatpush1.bf16.xpose.msra.mxu0 %v800
      %804 = vmatprep.subr.bf16.mxu0 0
      %805 = vmatpush1.bf16.xpose.msra.mxu0 0
      %806 = vmatprep.subr.bf16.mxu0 0
      %807 = vmatpush1.bf16.xpose.msra.mxu0 0
      %808 = vmatprep.subr.bf16.mxu0 0
      %809 = vmatpush1.bf16.xpose.msra.mxu0 0
      %810 = vmatprep.subr.bf16.mxu0 0
      %811 = vmatpush1.bf16.xpose.msra.mxu0 0
      %812 = vmatprep.subr.bf16.mxu0 0
      %813 = vmatpush1.bf16.xpose.msra.mxu0 0
      %814 = vmatprep.subr.bf16.mxu0 0
      %815 = vmatpush1.bf16.xpose.msra.mxu0 0
      %816 = vmatprep.subr.bf16.mxu0 0
      %817 = vmatpush1.bf16.xpose.msra.mxu0 0
      %818 = vmatprep.subr.bf16.mxu0 0
      %819 = vmatpush1.bf16.xpose.msra.mxu0 0
      %820 = vmatprep.subr.bf16.mxu0 0
      %821 = vmatpush1.bf16.xpose.msra.mxu0 0
      %822 = vmatprep.subr.bf16.mxu0 0
      %823 = vmatpush1.bf16.xpose.msra.mxu0 0
      %824 = vmatprep.subr.bf16.mxu0 0
      %825 = vmatpush1.bf16.xpose.msra.mxu0 0
      %826 = vmatprep.subr.bf16.mxu0 0
      %827 = vmatpush1.bf16.xpose.msra.mxu0 0
      %828 = vmatprep.subr.bf16.mxu0 0
      %829 = vmatpush1.bf16.xpose.msra.mxu0 0
      %830 = vmatprep.subr.bf16.mxu0 0
      %831 = vmatpush1.bf16.xpose.msra.mxu0 0
      %832 = vmatprep.subr.bf16.mxu0 0
      %833 = vmatpush1.bf16.xpose.msra.mxu0 0
      %834 = vmatprep.mubr.bf16.mxu0 0
      %835 = vmatmul.mubr.bf16.gmra.mrb[0].mxu0 %v797
      %v836 = vpop.f32.mrb[0].mxu0
      %v837 = vadd.f32 0.0, %v836
      %v838 = vpop.f32.mrb[0].mxu0
      %v839 = vpop.f32.mrb[0].mxu0
      %v840 = vpop.f32.mrb[0].mxu0
      %841 = vdwg.mxu0
      %v842 = vmul.f32 %v837, 0.25
      %v843 = vadd.f32 %v842, %v616
      %v844 = vsel %vm619, %v843, -inf
      %845 = vmax.xlane.f32.xlu0 %v844
      %v846 = vpop.xlane.xlu0 %845
      %v847 = vsub.f32 %v843, %v846
      %v848 = vmul.f32 %v847, 1.442695
      %v849 = vpow.pop %v848
      %v850 = vsel %vm619, %v849, 0.0
      %851 = vadd.xlane.f32.xlu0 %v850
      %v852 = vpop.xlane.xlu0 %851
      %v853 = vrcp.pop %v852
      %v854 = vmul.f32 %v849, %v853
      %v855 = vpack.c.bf16 %v854, %v854
      %856 = vrot.lane.b32.xlu0 %v560, 96
      %v857 = vpop.permute.xlu0 %856
      %v859 = vsel %vm619, %v855, 0
      %v862 = vsel %vm635, %v857, 0
      %864 = vmatprep.subr.bf16.mxu0 0
      %865 = vmatpush1.bf16.msra.mxu0 %v862
      %866 = vmatprep.subr.bf16.mxu0 0
      %867 = vmatpush1.bf16.msra.mxu0 0
      %868 = vmatprep.subr.bf16.mxu0 0
      %869 = vmatpush1.bf16.msra.mxu0 0
      %870 = vmatprep.subr.bf16.mxu0 0
      %871 = vmatpush1.bf16.msra.mxu0 0
      %872 = vmatprep.subr.bf16.mxu0 0
      %873 = vmatpush1.bf16.msra.mxu0 0
      %874 = vmatprep.subr.bf16.mxu0 0
      %875 = vmatpush1.bf16.msra.mxu0 0
      %876 = vmatprep.subr.bf16.mxu0 0
      %877 = vmatpush1.bf16.msra.mxu0 0
      %878 = vmatprep.subr.bf16.mxu0 0
      %879 = vmatpush1.bf16.msra.mxu0 0
      %880 = vmatprep.subr.bf16.mxu0 0
      %881 = vmatpush1.bf16.msra.mxu0 0
      %882 = vmatprep.subr.bf16.mxu0 0
      %883 = vmatpush1.bf16.msra.mxu0 0
      %884 = vmatprep.subr.bf16.mxu0 0
      %885 = vmatpush1.bf16.msra.mxu0 0
      %886 = vmatprep.subr.bf16.mxu0 0
      %887 = vmatpush1.bf16.msra.mxu0 0
      %888 = vmatprep.subr.bf16.mxu0 0
      %889 = vmatpush1.bf16.msra.mxu0 0
      %890 = vmatprep.subr.bf16.mxu0 0
      %891 = vmatpush1.bf16.msra.mxu0 0
      %892 = vmatprep.subr.bf16.mxu0 0
      %893 = vmatpush1.bf16.msra.mxu0 0
      %894 = vmatprep.subr.bf16.mxu0 0
      %895 = vmatpush1.bf16.msra.mxu0 0
      %896 = vmatprep.mubr.bf16.mxu0 0
      %897 = vmatmul.mubr.bf16.gmra.mrb[0].mxu0 %v859
      %v898 = vpop.f32.mrb[0].mxu0
      %v899 = vadd.f32 0.0, %v898
      %v900 = vpop.f32.mrb[0].mxu0
      %v901 = vpop.f32.mrb[0].mxu0
      %v902 = vpop.f32.mrb[0].mxu0
      %903 = vdwg.mxu0
      %904 = vrot.lane.b32.xlu0 %v559, 80
      %v905 = vpop.permute.xlu0 %904
      %906 = vrot.lane.b32.xlu0 %v559, 16
      %v907 = vpop.permute.xlu0 %906
      %v909 = vsel %vm564, %v905, 0
      %v912 = vsel %vm564, %v907, 0
      %914 = vmatprep.subr.bf16.mxu0 0
      %915 = vmatpush1.bf16.xpose.msra.mxu0 %v912
      %916 = vmatprep.subr.bf16.mxu0 0
      %917 = vmatpush1.bf16.xpose.msra.mxu0 0
      %918 = vmatprep.subr.bf16.mxu0 0
      %919 = vmatpush1.bf16.xpose.msra.mxu0 0
      %920 = vmatprep.subr.bf16.mxu0 0
      %921 = vmatpush1.bf16.xpose.msra.mxu0 0
      %922 = vmatprep.subr.bf16.mxu0 0
      %923 = vmatpush1.bf16.xpose.msra.mxu0 0
      %924 = vmatprep.subr.bf16.mxu0 0
      %925 = vmatpush1.bf16.xpose.msra.mxu0 0
      %926 = vmatprep.subr.bf16.mxu0 0
      %927 = vmatpush1.bf16.xpose.msra.mxu0 0
      %928 = vmatprep.subr.bf16.mxu0 0
      %929 = vmatpush1.bf16.xpose.msra.mxu0 0
      %930 = vmatprep.subr.bf16.mxu0 0
      %931 = vmatpush1.bf16.xpose.msra.mxu0 0
      %932 = vmatprep.subr.bf16.mxu0 0
      %933 = vmatpush1.bf16.xpose.msra.mxu0 0
      %934 = vmatprep.subr.bf16.mxu0 0
      %935 = vmatpush1.bf16.xpose.msra.mxu0 0
      %936 = vmatprep.subr.bf16.mxu0 0
      %937 = vmatpush1.bf16.xpose.msra.mxu0 0
      %938 = vmatprep.subr.bf16.mxu0 0
      %939 = vmatpush1.bf16.xpose.msra.mxu0 0
      %940 = vmatprep.subr.bf16.mxu0 0
      %941 = vmatpush1.bf16.xpose.msra.mxu0 0
      %942 = vmatprep.subr.bf16.mxu0 0
      %943 = vmatpush1.bf16.xpose.msra.mxu0 0
      %944 = vmatprep.subr.bf16.mxu0 0
      %945 = vmatpush1.bf16.xpose.msra.mxu0 0
      %946 = vmatprep.mubr.bf16.mxu0 0
      %947 = vmatmul.mubr.bf16.gmra.mrb[0].mxu0 %v909
      %v948 = vpop.f32.mrb[0].mxu0
      %v949 = vadd.f32 0.0, %v948
      %v950 = vpop.f32.mrb[0].mxu0
      %v951 = vpop.f32.mrb[0].mxu0
      %v952 = vpop.f32.mrb[0].mxu0
      %953 = vdwg.mxu0
      %v954 = vmul.f32 %v949, 0.25
      %v955 = vadd.f32 %v954, %v616
      %v956 = vsel %vm619, %v955, -inf
      %957 = vmax.xlane.f32.xlu0 %v956
      %v958 = vpop.xlane.xlu0 %957
      %v959 = vsub.f32 %v955, %v958
      %v960 = vmul.f32 %v959, 1.442695
      %v961 = vpow.pop %v960
      %v962 = vsel %vm619, %v961, 0.0
      %963 = vadd.xlane.f32.xlu0 %v962
      %v964 = vpop.xlane.xlu0 %963
      %v965 = vrcp.pop %v964
      %v966 = vmul.f32 %v961, %v965
      %v967 = vpack.c.bf16 %v966, %v966
      %968 = vrot.lane.b32.xlu0 %v560, 80
      %v969 = vpop.permute.xlu0 %968
      %v971 = vsel %vm619, %v967, 0
      %v974 = vsel %vm635, %v969, 0
      %976 = vmatprep.subr.bf16.mxu0 0
      %977 = vmatpush1.bf16.msra.mxu0 %v974
      %978 = vmatprep.subr.bf16.mxu0 0
      %979 = vmatpush1.bf16.msra.mxu0 0
      %980 = vmatprep.subr.bf16.mxu0 0
      %981 = vmatpush1.bf16.msra.mxu0 0
      %982 = vmatprep.subr.bf16.mxu0 0
      %983 = vmatpush1.bf16.msra.mxu0 0
      %984 = vmatprep.subr.bf16.mxu0 0
      %985 = vmatpush1.bf16.msra.mxu0 0
      %986 = vmatprep.subr.bf16.mxu0 0
      %987 = vmatpush1.bf16.msra.mxu0 0
      %988 = vmatprep.subr.bf16.mxu0 0
      %989 = vmatpush1.bf16.msra.mxu0 0
      %990 = vmatprep.subr.bf16.mxu0 0
      %991 = vmatpush1.bf16.msra.mxu0 0
      %992 = vmatprep.subr.bf16.mxu0 0
      %993 = vmatpush1.bf16.msra.mxu0 0
      %994 = vmatprep.subr.bf16.mxu0 0
      %995 = vmatpush1.bf16.msra.mxu0 0
      %996 = vmatprep.subr.bf16.mxu0 0
      %997 = vmatpush1.bf16.msra.mxu0 0
      %998 = vmatprep.subr.bf16.mxu0 0
      %999 = vmatpush1.bf16.msra.mxu0 0
      %1000 = vmatprep.subr.bf16.mxu0 0
      %1001 = vmatpush1.bf16.msra.mxu0 0
      %1002 = vmatprep.subr.bf16.mxu0 0
      %1003 = vmatpush1.bf16.msra.mxu0 0
      %1004 = vmatprep.subr.bf16.mxu0 0
      %1005 = vmatpush1.bf16.msra.mxu0 0
      %1006 = vmatprep.subr.bf16.mxu0 0
      %1007 = vmatpush1.bf16.msra.mxu0 0
      %1008 = vmatprep.mubr.bf16.mxu0 0
      %1009 = vmatmul.mubr.bf16.gmra.mrb[0].mxu0 %v971
      %v1010 = vpop.f32.mrb[0].mxu0
      %v1011 = vadd.f32 0.0, %v1010
      %v1012 = vpop.f32.mrb[0].mxu0
      %v1013 = vpop.f32.mrb[0].mxu0
      %v1014 = vpop.f32.mrb[0].mxu0
      %1015 = vdwg.mxu0
      %1017 = vrot.lane.b32.xlu0 %v787, 16
      %v1018 = vpop.permute.xlu0 %1017
      %1021 = vrot.lane.b32.xlu0 %v899, 32
      %v1022 = vpop.permute.xlu0 %1021
      %1025 = vrot.lane.b32.xlu0 %v1011, 48
      %v1026 = vpop.permute.xlu0 %1025
      %v1028 = vsel %vm564, %v674, %v1018
      %vm1029 = vcmask 261120
      %v1030 = vsel %vm1029, %v1028, %v1022
      %vm1031 = vcmask 392192
      %v1032 = vsel %vm1031, %v1030, %v1026
      %v1033 = vpack.c.bf16 %v1032, %v1032
      %v1034 = vld [vmem:[%s4] sm:$0xf]
      %v1035 = vld [vmem:[%s4 + $0x4] sm:$0xf]
      %v1036 = vld [vmem:[%s4 + $0x8] sm:$0xf]
      %v1037 = vld [vmem:[%s4 + $0xc] sm:$0xf]
      %v1038 = vld [vmem:[%s4 + $0x10] sm:$0xf]
      %v1039 = vld [vmem:[%s4 + $0x14] sm:$0xf]
      %v1040 = vld [vmem:[%s4 + $0x18] sm:$0xf]
      %v1041 = vld [vmem:[%s4 + $0x1c] sm:$0xf]
      %v1050 = vunpack.c.l.b16 %v1034
      %v1051 = vunpack.c.l.b16 %v1035
      %v1052 = vunpack.c.l.b16 %v1036
      %v1053 = vunpack.c.l.b16 %v1037
      %v1054 = vunpack.c.l.b16 %v1038
      %v1055 = vunpack.c.l.b16 %v1039
      %v1056 = vunpack.c.l.b16 %v1040
      %v1057 = vunpack.c.l.b16 %v1041
      %v1058 = vpack.c.b16 %v1051, %v1050
      %v1059 = vpack.c.b16 %v1053, %v1052
      %v1060 = vpack.c.b16 %v1055, %v1054
      %v1061 = vpack.c.b16 %v1057, %v1056
      %v1067 = vsel %vm513, %v1033, 0
      %1069 = vmatprep.subr.bf16.mxu0 0
      %1070 = vmatpush1.bf16.msra.mxu0 %v1058
      %1071 = vmatprep.subr.bf16.mxu0 0
      %1072 = vmatpush1.bf16.msra.mxu0 %v1059
      %1073 = vmatprep.subr.bf16.mxu0 0
      %1074 = vmatpush1.bf16.msra.mxu0 %v1060
      %1075 = vmatprep.subr.bf16.mxu0 0
      %1076 = vmatpush1.bf16.msra.mxu0 %v1061
      %1077 = vmatprep.subr.bf16.mxu0 0
      %1078 = vmatpush1.bf16.msra.mxu0 0
      %1079 = vmatprep.subr.bf16.mxu0 0
      %1080 = vmatpush1.bf16.msra.mxu0 0
      %1081 = vmatprep.subr.bf16.mxu0 0
      %1082 = vmatpush1.bf16.msra.mxu0 0
      %1083 = vmatprep.subr.bf16.mxu0 0
      %1084 = vmatpush1.bf16.msra.mxu0 0
      %1085 = vmatprep.subr.bf16.mxu0 0
      %1086 = vmatpush1.bf16.msra.mxu0 0
      %1087 = vmatprep.subr.bf16.mxu0 0
      %1088 = vmatpush1.bf16.msra.mxu0 0
      %1089 = vmatprep.subr.bf16.mxu0 0
      %1090 = vmatpush1.bf16.msra.mxu0 0
      %1091 = vmatprep.subr.bf16.mxu0 0
      %1092 = vmatpush1.bf16.msra.mxu0 0
      %1093 = vmatprep.subr.bf16.mxu0 0
      %1094 = vmatpush1.bf16.msra.mxu0 0
      %1095 = vmatprep.subr.bf16.mxu0 0
      %1096 = vmatpush1.bf16.msra.mxu0 0
      %1097 = vmatprep.subr.bf16.mxu0 0
      %1098 = vmatpush1.bf16.msra.mxu0 0
      %1099 = vmatprep.subr.bf16.mxu0 0
      %1100 = vmatpush1.bf16.msra.mxu0 0
      %1101 = vmatprep.mubr.bf16.mxu0 0
      %1102 = vmatmul.mubr.bf16.gmra.mrb[0].mxu0 %v1067
      %v1103 = vpop.f32.mrb[0].mxu0
      %v1104 = vadd.f32 %v451, %v1103
      %v1105 = vpop.f32.mrb[0].mxu0
      %v1106 = vpop.f32.mrb[0].mxu0
      %v1107 = vpop.f32.mrb[0].mxu0
      %1108 = vdwg.mxu0
      %v1109 = vld [vmem:[%s5] sm:$0x1]
      %v1110 = vld [vmem:[%s6] sm:$0x1]
      %v1111 = vsel %vm513, %v1104, 0.0
      %1112 = vadd.xlane.f32.xlu0 %v1111
      %v1113 = vpop.xlane.xlu0 %1112
      %v1114 = vrcp.pop 64.0
      %v1115 = vmul.f32 %v1113, %v1114
      %v1116 = vsub.f32 %v1104, %v1115
      %v1117 = vmul.f32 %v1116, %v1116
      %v1118 = vsel %vm513, %v1117, 0.0
      %1119 = vadd.xlane.f32.xlu0 %v1118
      %v1120 = vpop.xlane.xlu0 %1119
      %v1121 = vmul.f32 %v1120, %v1114
      %v1122 = vadd.f32 %v1121, 1e-12
      %v1123 = vrsqrt.pop %v1122
      %v1124 = vmul.f32 %v1116, %v1123
      %v1126 = vlaneseq
      %v1127 = vshrl.u32 %v1126, 7
      %v1128 = vsub.s32 0, %v1127
      %v1129 = vrot.slane %v1109, %v1128
      %v1131 = vmul.f32 %v1124, %v1129
      %v1133 = vlaneseq
      %v1134 = vshrl.u32 %v1133, 7
      %v1135 = vsub.s32 0, %v1134
      %v1136 = vrot.slane %v1110, %v1135
      %v1138 = vadd.f32 %v1131, %v1136
      %v1139 = vpack.c.bf16 %v1138, %v1138
      %v1140 = vld [vmem:[%s7] sm:$0xf]
      %v1141 = vld [vmem:[%s7 + $0x4] sm:$0xf]
      %v1142 = vld [vmem:[%s7 + $0x8] sm:$0xf]
      %v1143 = vld [vmem:[%s7 + $0xc] sm:$0xf]
      %v1144 = vld [vmem:[%s7 + $0x10] sm:$0xf]
      %v1145 = vld [vmem:[%s7 + $0x14] sm:$0xf]
      %v1146 = vld [vmem:[%s7 + $0x18] sm:$0xf]
      %v1147 = vld [vmem:[%s7 + $0x1c] sm:$0xf]
      %v1148 = vld [vmem:[%s8] sm:$0x1]
      %v1150 = vlaneseq
      %v1151 = vshrl.u32 %v1150, 7
      %v1152 = vsub.s32 0, %v1151
      %v1153 = vrot.slane %v1148, %v1152
      %v1163 = vunpack.c.l.b16 %v1140
      %v1164 = vunpack.c.l.b16 %v1141
      %v1165 = vunpack.c.l.b16 %v1142
      %v1166 = vunpack.c.l.b16 %v1143
      %v1167 = vunpack.c.l.b16 %v1144
      %v1168 = vunpack.c.l.b16 %v1145
      %v1169 = vunpack.c.l.b16 %v1146
      %v1170 = vunpack.c.l.b16 %v1147
      %v1171 = vpack.c.b16 %v1164, %v1163
      %v1172 = vpack.c.b16 %v1166, %v1165
      %v1173 = vpack.c.b16 %v1168, %v1167
      %v1174 = vpack.c.b16 %v1170, %v1169
      %v1180 = vsel %vm513, %v1139, 0
      %1182 = vmatprep.subr.bf16.mxu0 0
      %1183 = vmatpush1.bf16.msra.mxu0 %v1171
      %1184 = vmatprep.subr.bf16.mxu0 0
      %1185 = vmatpush1.bf16.msra.mxu0 %v1172
      %1186 = vmatprep.subr.bf16.mxu0 0
      %1187 = vmatpush1.bf16.msra.mxu0 %v1173
      %1188 = vmatprep.subr.bf16.mxu0 0
      %1189 = vmatpush1.bf16.msra.mxu0 %v1174
      %1190 = vmatprep.subr.bf16.mxu0 0
      %1191 = vmatpush1.bf16.msra.mxu0 0
      %1192 = vmatprep.subr.bf16.mxu0 0
      %1193 = vmatpush1.bf16.msra.mxu0 0
      %1194 = vmatprep.subr.bf16.mxu0 0
      %1195 = vmatpush1.bf16.msra.mxu0 0
      %1196 = vmatprep.subr.bf16.mxu0 0
      %1197 = vmatpush1.bf16.msra.mxu0 0
      %1198 = vmatprep.subr.bf16.mxu0 0
      %1199 = vmatpush1.bf16.msra.mxu0 0
      %1200 = vmatprep.subr.bf16.mxu0 0
      %1201 = vmatpush1.bf16.msra.mxu0 0
      %1202 = vmatprep.subr.bf16.mxu0 0
      %1203 = vmatpush1.bf16.msra.mxu0 0
      %1204 = vmatprep.subr.bf16.mxu0 0
      %1205 = vmatpush1.bf16.msra.mxu0 0
      %1206 = vmatprep.subr.bf16.mxu0 0
      %1207 = vmatpush1.bf16.msra.mxu0 0
      %1208 = vmatprep.subr.bf16.mxu0 0
      %1209 = vmatpush1.bf16.msra.mxu0 0
      %1210 = vmatprep.subr.bf16.mxu0 0
      %1211 = vmatpush1.bf16.msra.mxu0 0
      %1212 = vmatprep.subr.bf16.mxu0 0
      %1213 = vmatpush1.bf16.msra.mxu0 0
      %1214 = vmatprep.mubr.bf16.mxu0 0
      %1215 = vmatmul.mubr.bf16.gmra.mrb[0].mxu0 %v1180
      %v1216 = vpop.f32.mrb[0].mxu0
      %v1217 = vadd.f32 %v1153, %v1216
      %v1218 = vpop.f32.mrb[0].mxu0
      %v1219 = vpop.f32.mrb[0].mxu0
      %v1220 = vpop.f32.mrb[0].mxu0
      %1221 = vdwg.mxu0
      %v1222 = vmul.f32 %v1217, %v1217
      %v1223 = vmul.f32 %v1217, %v1222
      %v1224 = vmul.f32 %v1223, 0.044715
      %v1225 = vadd.f32 %v1217, %v1224
      %v1226 = vmul.f32 %v1225, 0.7978846
      %v1227 = vtanh.pop %v1226
      %v1228 = vadd.f32 %v1227, 1.0
      %v1229 = vmul.f32 %v1228, 0.5
      %v1230 = vmul.f32 %v1217, %v1229
      %v1231 = vpack.c.bf16 %v1230, %v1230
      %v1232 = vld [vmem:[%s9] sm:$0xf]
      %v1233 = vld [vmem:[%s9 + $0x4] sm:$0xf]
      %v1234 = vld [vmem:[%s9 + $0x8] sm:$0xf]
      %v1235 = vld [vmem:[%s9 + $0xc] sm:$0xf]
      %v1236 = vld [vmem:[%s9 + $0x10] sm:$0xf]
      %v1237 = vld [vmem:[%s9 + $0x14] sm:$0xf]
      %v1238 = vld [vmem:[%s9 + $0x18] sm:$0xf]
      %v1239 = vld [vmem:[%s9 + $0x1c] sm:$0xf]
      %v1240 = vld [vmem:[%s9 + $0x20] sm:$0xf]
      %v1241 = vld [vmem:[%s9 + $0x24] sm:$0xf]
      %v1242 = vld [vmem:[%s9 + $0x28] sm:$0xf]
      %v1243 = vld [vmem:[%s9 + $0x2c] sm:$0xf]
      %v1244 = vld [vmem:[%s9 + $0x30] sm:$0xf]
      %v1245 = vld [vmem:[%s9 + $0x34] sm:$0xf]
      %v1246 = vld [vmem:[%s9 + $0x38] sm:$0xf]
      %v1247 = vld [vmem:[%s9 + $0x3c] sm:$0xf]
      %v1248 = vld [vmem:[%s10] sm:$0x1]
      %v1250 = vlaneseq
      %v1251 = vshrl.u32 %v1250, 7
      %v1252 = vsub.s32 0, %v1251
      %v1253 = vrot.slane %v1248, %v1252
      %v1271 = vunpack.c.l.b16 %v1232
      %v1272 = vunpack.c.l.b16 %v1233
      %v1273 = vunpack.c.l.b16 %v1234
      %v1274 = vunpack.c.l.b16 %v1235
      %v1275 = vunpack.c.l.b16 %v1236
      %v1276 = vunpack.c.l.b16 %v1237
      %v1277 = vunpack.c.l.b16 %v1238
      %v1278 = vunpack.c.l.b16 %v1239
      %v1279 = vunpack.c.l.b16 %v1240
      %v1280 = vunpack.c.l.b16 %v1241
      %v1281 = vunpack.c.l.b16 %v1242
      %v1282 = vunpack.c.l.b16 %v1243
      %v1283 = vunpack.c.l.b16 %v1244
      %v1284 = vunpack.c.l.b16 %v1245
      %v1285 = vunpack.c.l.b16 %v1246
      %v1286 = vunpack.c.l.b16 %v1247
      %v1287 = vpack.c.b16 %v1272, %v1271
      %v1288 = vpack.c.b16 %v1274, %v1273
      %v1289 = vpack.c.b16 %v1276, %v1275
      %v1290 = vpack.c.b16 %v1278, %v1277
      %v1291 = vpack.c.b16 %v1280, %v1279
      %v1292 = vpack.c.b16 %v1282, %v1281
      %v1293 = vpack.c.b16 %v1284, %v1283
      %v1294 = vpack.c.b16 %v1286, %v1285
      %1303 = vmatprep.subr.bf16.mxu0 0
      %1304 = vmatpush1.bf16.msra.mxu0 %v1287
      %1305 = vmatprep.subr.bf16.mxu0 0
      %1306 = vmatpush1.bf16.msra.mxu0 %v1288
      %1307 = vmatprep.subr.bf16.mxu0 0
      %1308 = vmatpush1.bf16.msra.mxu0 %v1289
      %1309 = vmatprep.subr.bf16.mxu0 0
      %1310 = vmatpush1.bf16.msra.mxu0 %v1290
      %1311 = vmatprep.subr.bf16.mxu0 0
      %1312 = vmatpush1.bf16.msra.mxu0 %v1291
      %1313 = vmatprep.subr.bf16.mxu0 0
      %1314 = vmatpush1.bf16.msra.mxu0 %v1292
      %1315 = vmatprep.subr.bf16.mxu0 0
      %1316 = vmatpush1.bf16.msra.mxu0 %v1293
      %1317 = vmatprep.subr.bf16.mxu0 0
      %1318 = vmatpush1.bf16.msra.mxu0 %v1294
      %1319 = vmatprep.subr.bf16.mxu0 0
      %1320 = vmatpush1.bf16.msra.mxu0 0
      %1321 = vmatprep.subr.bf16.mxu0 0
      %1322 = vmatpush1.bf16.msra.mxu0 0
      %1323 = vmatprep.subr.bf16.mxu0 0
      %1324 = vmatpush1.bf16.msra.mxu0 0
      %1325 = vmatprep.subr.bf16.mxu0 0
      %1326 = vmatpush1.bf16.msra.mxu0 0
      %1327 = vmatprep.subr.bf16.mxu0 0
      %1328 = vmatpush1.bf16.msra.mxu0 0
      %1329 = vmatprep.subr.bf16.mxu0 0
      %1330 = vmatpush1.bf16.msra.mxu0 0
      %1331 = vmatprep.subr.bf16.mxu0 0
      %1332 = vmatpush1.bf16.msra.mxu0 0
      %1333 = vmatprep.subr.bf16.mxu0 0
      %1334 = vmatpush1.bf16.msra.mxu0 0
      %1335 = vmatprep.mubr.bf16.mxu0 0
      %1336 = vmatmul.mubr.bf16.gmra.mrb[0].mxu0 %v1231
      %v1337 = vpop.f32.mrb[0].mxu0
      %v1338 = vadd.f32 %v1253, %v1337
      %v1339 = vpop.f32.mrb[0].mxu0
      %v1340 = vpop.f32.mrb[0].mxu0
      %v1341 = vpop.f32.mrb[0].mxu0
      %1342 = vdwg.mxu0
      %v1343 = vadd.f32 %v1338, %v1138
      %v1344 = vld [vmem:[%s11] sm:$0x1]
      %v1345 = vld [vmem:[%s12] sm:$0x1]
      %v1346 = vsel %vm513, %v1343, 0.0
      %1347 = vadd.xlane.f32.xlu0 %v1346
      %v1348 = vpop.xlane.xlu0 %1347
      %v1349 = vmul.f32 %v1348, %v1114
      %v1350 = vsub.f32 %v1343, %v1349
      %v1351 = vmul.f32 %v1350, %v1350
      %v1352 = vsel %vm513, %v1351, 0.0
      %1353 = vadd.xlane.f32.xlu0 %v1352
      %v1354 = vpop.xlane.xlu0 %1353
      %v1355 = vmul.f32 %v1354, %v1114
      %v1356 = vadd.f32 %v1355, 1e-12
      %v1357 = vrsqrt.pop %v1356
      %v1358 = vmul.f32 %v1350, %v1357
      %v1360 = vlaneseq
      %v1361 = vshrl.u32 %v1360, 7
      %v1362 = vsub.s32 0, %v1361
      %v1363 = vrot.slane %v1344, %v1362
      %v1365 = vmul.f32 %v1358, %v1363
      %v1367 = vlaneseq
      %v1368 = vshrl.u32 %v1367, 7
      %v1369 = vsub.s32 0, %v1368
      %v1370 = vrot.slane %v1345, %v1369
      %v1372 = vadd.f32 %v1365, %v1370
      %1373 = vst.msk [vmem:[%s449] sm:$0xff] %vm513, %v1372
      %p1374 = scmp.lt.s32.totalorder %s24, 1
      %s1375 = scalar_select %p1374, %s24, 1
      %s1376 = smul.addr %s1375, 8
      %s1377 = scalar_lea.vmem %s13, %s1376
      // Predicated region
      $region73: #{_lambda_.3} parent=71 // pred_check
        %p1378 = pneg %p325
      $region74: #{_lambda_.3} parent=71 // pred_check_branch
        %1380 = sbr.rel (%p1378) target = $region76
      $region75: #{_lambda_.3} parent=71 // pred_region
        _
      $region76: #{_lambda_.3} parent=71 // pred_fallthru
        _
    $region72: #{_lambda_.3} parent=5 // pred_fallthru
      _
    %p1381 = scmp.le.s32.totalorder 2, %s19
    // Predicated region
    $region77: #{_lambda_.3} parent=5 // pred_check
      %p1382 = pneg %p1381
    $region78: #{_lambda_.3} parent=5 // pred_check_branch
      %1384 = sbr.rel (%p1382) target = $region80
    $region79: #{_lambda_.3} parent=5 // pred_region
      %s1385 = ssub.s32 %s19, 2
      // Predicated region
      $region81: #{_lambda_.3} parent=79 // pred_check
        %p1386 = pneg %p331
      $region82: #{_lambda_.3} parent=79 // pred_check_branch
        %1388 = sbr.rel (%p1386) target = $region84
      $region83: #{_lambda_.3} parent=79 // pred_region
        %p1389 = scmp.lt.s32.totalorder %s25, 1
        %s1390 = scalar_select %p1389, %s25, 1
        %s1391 = smul.addr %s1390, 8
        %s1392 = scalar_lea.vmem %s13, %s1391
      $region84: #{_lambda_.3} parent=79 // pred_fallthru
        _
    $region80: #{_lambda_.3} parent=5 // pred_fallthru
      _
  $region6: #{_lambda_.3} parent=0 // loop_footer
    %s23 = sadd.s32 1, %s19
  $region7: #{_lambda_.3} parent=0 // loop_footer_branch
    %18 = sbr.rel target = $region3
  $region8: #{_lambda_.3} parent=0 // loop_exit
    _

</llo_original>
